<compile_context>
chip_gen: v7x
topology: tpu7x:2x2x1
jax: 0.10.0
libtpu: 0.0.40
codegen_flags: <defaults>
</compile_context>

<pallas_src>
import math

import jax
import jax.numpy as jnp
from jax.experimental import pallas as pl
from jax.experimental.pallas import tpu as pltpu

# Model hyper-parameters (match the PyTorch module defaults, mode='lstm').
INPUT_SIZE = 8
HIDDEN_SIZE = 32
NUM_LAYERS = 2
OUTPUT_SIZE = 1

# Example input sizes.
BATCH = 2
SEQ_LEN = 8

LANES = 128   # = 4 * HIDDEN_SIZE, also the vreg lane width
IN_PAD = 16   # input feature dim zero-padded so every bf16 slab slice is 16-aligned

# Row offsets inside the packed bf16 weight slab (all multiples of 16 so every
# bf16 sublane slice is tile-aligned).
R_WIH0 = 0                          # (IN_PAD, 4H) layer-0 input weights (rows 8:16 zero)
R_WHH0 = R_WIH0 + IN_PAD            # (H, 4H)      layer-0 recurrent weights
R_WIH1 = R_WHH0 + HIDDEN_SIZE       # (H, 4H)      layer-1 input weights (from h0)
R_WHH1 = R_WIH1 + HIDDEN_SIZE       # (H, 4H)      layer-1 recurrent weights
R_WFC1 = R_WHH1 + HIDDEN_SIZE       # (H, 128)     linear1, cols 0:32 valid
R_WFC2 = R_WFC1 + HIDDEN_SIZE       # (128, 128)   linear2, rows 0:32 / col 0 valid
W_ROWS = R_WFC2 + LANES             # 272 rows total


def _make_kernel(T, B):
    H = HIDDEN_SIZE

    def kernel(
        x_ref,    # (T*B, IN_PAD) f32, time-major (row t*B + b), cols >= 8 zero
        w_ref,    # (272, 128)    bf16 packed weight slab
        b_ref,    # (8, 128)      f32  packed bias slab
        out_ref,  # (B, 128)      f32  lane-dense output (col 0 = model output)
    ):
        # Weight blocks (already bf16; all slices 16-row aligned, loaded once).
        wih0 = w_ref[R_WIH0:R_WIH0 + IN_PAD, :]
        whh0 = w_ref[R_WHH0:R_WHH0 + H, :]
        wih1 = w_ref[R_WIH1:R_WIH1 + H, :]
        whh1 = w_ref[R_WHH1:R_WHH1 + H, :]
        wfc1 = w_ref[R_WFC1:R_WFC1 + H, :]
        wfc2 = w_ref[R_WFC2:R_WFC2 + LANES, :]

        bias = b_ref[...]          # (8, 128) f32
        b0 = bias[0:1, :]          # b_ih_l0 + b_hh_l0
        b1 = bias[1:2, :]          # b_ih_l1 + b_hh_l1
        bfc1 = bias[2:3, :]        # linear1 bias (cols 0:32 valid, rest zero)
        bfc2 = bias[3:4, :]        # linear2 bias (col 0 valid, rest zero)

        # Hoisted, carry-independent layer-0 x-projection for all T steps at
        # once, bias folded in: only h0 @ whh0 remains on the per-step chain.
        zx = jnp.dot(x_ref[...].astype(jnp.bfloat16), wih0,
                     preferred_element_type=jnp.float32) + b0    # (T*B, 128)

        def gates(z, c):
            # One full-width sigmoid + one full-width tanh over (B, 4H=128),
            # then slice -> 3 EUP pushes per cell instead of 5.
            sig = jax.nn.sigmoid(z)
            tnh = jnp.tanh(z)
            i_g = sig[:, 0 * H:1 * H]
            f_g = sig[:, 1 * H:2 * H]
            o_g = sig[:, 3 * H:4 * H]
            g_g = tnh[:, 2 * H:3 * H]
            c_new = f_g * c + i_g * g_g
            h_new = o_g * jnp.tanh(c_new)
            return h_new, c_new

        zeros = jnp.zeros((B, H), jnp.float32)
        h0, c0, h1, c1 = zeros, zeros, zeros, zeros
        # Off-chain recurrent half of layer 1 (h1_prev @ whh1 + b1); the
        # initial hidden state is zero, so it starts at b1.
        r1 = jnp.broadcast_to(b1, (B, LANES)).astype(jnp.float32)

        # Fully unrolled time loop (T is a small static constant): the LLO
        # scheduler can overlap the off-chain zx slice / r1 matmul of one step
        # with the carry chain of its neighbours.
        for t in range(T):
            # Layer 0: only the carry-dependent matmul sits on the chain.
            z0 = zx[t * B:(t + 1) * B, :] + jnp.dot(
                h0.astype(jnp.bfloat16), whh0, preferred_element_type=jnp.float32)
            h0, c0 = gates(z0, c0)
            # Layer 1: recurrent half (r1) was computed off-chain last step.
            z1 = jnp.dot(h0.astype(jnp.bfloat16), wih1,
                         preferred_element_type=jnp.float32) + r1
            h1, c1 = gates(z1, c1)
            # Prepare next step's recurrent half; off the critical chain.
            r1 = jnp.dot(h1.astype(jnp.bfloat16), whh1,
                         preferred_element_type=jnp.float32) + b1

        # Head on the last-step top-layer hidden state; everything is padded
        # to 128 lanes / 128 rows so no 32-lane slices are needed.
        y = jnp.dot(h1.astype(jnp.bfloat16), wfc1,
                    preferred_element_type=jnp.float32) + bfc1
        y = jnp.where(y > 0, y, 0.01 * y)                 # leaky_relu (slope 0.01)
        y = jnp.dot(y.astype(jnp.bfloat16), wfc2,
                    preferred_element_type=jnp.float32) + bfc2   # (B, 128)
        out_ref[...] = y.astype(out_ref.dtype)

    return kernel


def pack_params(params):
    """Pack the 10 small parameter arrays into a bf16 weight slab + f32 bias slab."""
    wih0, whh0, b0, wih1, whh1, b1, w1, bl1, w2, bl2 = params
    wih0_pad = jnp.zeros((IN_PAD, LANES), jnp.float32).at[:INPUT_SIZE, :].set(wih0)
    wfc1_pad = jnp.zeros((HIDDEN_SIZE, LANES), jnp.float32).at[:, :32].set(w1)
    wfc2_pad = jnp.zeros((LANES, LANES), jnp.float32).at[:32, :OUTPUT_SIZE].set(w2)
    w_slab = jnp.concatenate(
        [wih0_pad, whh0, wih1, whh1, wfc1_pad, wfc2_pad], axis=0
    ).astype(jnp.bfloat16)                                   # (272, 128) bf16
    assert w_slab.shape == (W_ROWS, LANES)

    b_slab = jnp.zeros((8, LANES), jnp.float32)
    b_slab = b_slab.at[0, :].set(b0[0])                      # b_ih_l0 + b_hh_l0
    b_slab = b_slab.at[1, :].set(b1[0])                      # b_ih_l1 + b_hh_l1
    b_slab = b_slab.at[2, :32].set(bl1[0])                   # linear1 bias
    b_slab = b_slab.at[3, :OUTPUT_SIZE].set(bl2[0])          # linear2 bias
    return w_slab, b_slab


@jax.jit
def lstm_forward(x_btI, w_slab, b_slab):
    """x_btI: (B, T, I) batch_first, like the PyTorch module."""
    B, T, I = x_btI.shape
    # Time-major, flattened to (T*B, I), zero-padded to IN_PAD features so the
    # hoisted x-projection uses the full 16-row (tile-aligned) weight block.
    x = jnp.transpose(x_btI, (1, 0, 2)).reshape(T * B, I)
    x = jnp.pad(x, ((0, 0), (0, IN_PAD - I)))

    vmem = lambda: pl.BlockSpec(memory_space=pltpu.MemorySpace.VMEM)
    out = pl.pallas_call(
        _make_kernel(T, B),
        out_shape=jax.ShapeDtypeStruct((B, LANES), jnp.float32),
        in_specs=[vmem(), vmem(), vmem()],
        out_specs=vmem(),
    )(x, w_slab, b_slab)
    return out[:, :OUTPUT_SIZE]


def init_params(key):
    """Deterministic init matching PyTorch's default U(-k, k) shapes."""
    keys = jax.random.split(key, 16)
    k_lstm = 1.0 / math.sqrt(HIDDEN_SIZE)

    def u(k, shape, bound):
        return jax.random.uniform(k, shape, jnp.float32, -bound, bound)

    H4 = 4 * HIDDEN_SIZE
    # Layer 0 (input_size -> hidden); stored transposed: (in, 4H).
    wih0 = u(keys[0], (INPUT_SIZE, H4), k_lstm)
    whh0 = u(keys[1], (HIDDEN_SIZE, H4), k_lstm)
    b0 = u(keys[2], (1, H4), k_lstm) + u(keys[3], (1, H4), k_lstm)  # b_ih + b_hh
    # Layer 1 (hidden -> hidden).
    wih1 = u(keys[4], (HIDDEN_SIZE, H4), k_lstm)
    whh1 = u(keys[5], (HIDDEN_SIZE, H4), k_lstm)
    b1 = u(keys[6], (1, H4), k_lstm) + u(keys[7], (1, H4), k_lstm)
    # linear1: Linear(hidden, 32)
    k1 = 1.0 / math.sqrt(HIDDEN_SIZE)
    w1 = u(keys[8], (HIDDEN_SIZE, 32), k1)
    bl1 = u(keys[9], (1, 32), k1)
    # linear2: Linear(32, output_size)
    k2 = 1.0 / math.sqrt(32)
    w2 = u(keys[10], (32, OUTPUT_SIZE), k2)
    bl2 = u(keys[11], (1, OUTPUT_SIZE), k2)

    return (wih0, whh0, b0, wih1, whh1, b1, w1, bl1, w2, bl2)


def ref_forward(x_btI, params):
    """Pure-JAX f32 reference with the exact PyTorch LSTM + head semantics."""
    wih0, whh0, b0, wih1, whh1, b1, w1, bl1, w2, bl2 = params
    B, T, _ = x_btI.shape
    H = HIDDEN_SIZE

    def cell(x_t, h, c, wih, whh, b):
        z = x_t @ wih + h @ whh + b
        i = jax.nn.sigmoid(z[:, 0 * H:1 * H])
        f = jax.nn.sigmoid(z[:, 1 * H:2 * H])
        g = jnp.tanh(z[:, 2 * H:3 * H])
        o = jax.nn.sigmoid(z[:, 3 * H:4 * H])
        c = f * c + i * g
        h = o * jnp.tanh(c)
        return h, c

    h0 = c0 = h1 = c1 = jnp.zeros((B, H), jnp.float32)
    for t in range(T):
        x_t = x_btI[:, t, :]
        h0, c0 = cell(x_t, h0, c0, wih0, whh0, b0)
        h1, c1 = cell(h0, h1, c1, wih1, whh1, b1)
    y = h1 @ w1 + bl1
    y = jnp.where(y > 0, y, 0.01 * y)
    return y @ w2 + bl2


if __name__ == "__main__":
    key = jax.random.PRNGKey(0)
    k_x, k_w = jax.random.split(key)
    x = jax.random.normal(k_x, (BATCH, SEQ_LEN, INPUT_SIZE), jnp.float32)
    params = init_params(k_w)

    # One-time host-side packing (weights pre-cast to bf16, biases pre-summed).
    w_slab, b_slab = pack_params(params)

    out = lstm_forward(x, w_slab, b_slab)
    jax.block_until_ready(out)

    ref = ref_forward(x, params)
    assert out.shape == (BATCH, OUTPUT_SIZE)
    assert bool(jnp.all(jnp.isfinite(out)))
    assert bool(jnp.allclose(out, ref, atol=3e-2, rtol=3e-2)), (out, ref)
    print("KERNEL_OK")
</pallas_src>

<mosaic_0001>
module attributes {stable_mosaic.version = 11 : i64} {
  func.func @kernel(%arg0: memref<16x16xf32, #tpu.memory_space<vmem>>, %arg1: memref<272x128xbf16, #tpu.memory_space<vmem>>, %arg2: memref<8x128xf32, #tpu.memory_space<vmem>>, %arg3: memref<2x128xf32, #tpu.memory_space<vmem>>) attributes {dimension_semantics = [], scalar_prefetch = 0 : i64, scratch_operands = 0 : i64, tpu.core_type = #tpu.core_type<tc>} {
    %c0 = arith.constant 0 : index
    %c0_0 = arith.constant 0 : index
    %0 = vector.load %arg1[%c0, %c0_0] : memref<272x128xbf16, #tpu.memory_space<vmem>>, vector<16x128xbf16>
    %c16 = arith.constant 16 : index
    %c0_1 = arith.constant 0 : index
    %1 = vector.load %arg1[%c16, %c0_1] : memref<272x128xbf16, #tpu.memory_space<vmem>>, vector<32x128xbf16>
    %c48 = arith.constant 48 : index
    %c0_2 = arith.constant 0 : index
    %2 = vector.load %arg1[%c48, %c0_2] : memref<272x128xbf16, #tpu.memory_space<vmem>>, vector<32x128xbf16>
    %c80 = arith.constant 80 : index
    %c0_3 = arith.constant 0 : index
    %3 = vector.load %arg1[%c80, %c0_3] : memref<272x128xbf16, #tpu.memory_space<vmem>>, vector<32x128xbf16>
    %c112 = arith.constant 112 : index
    %c0_4 = arith.constant 0 : index
    %4 = vector.load %arg1[%c112, %c0_4] : memref<272x128xbf16, #tpu.memory_space<vmem>>, vector<32x128xbf16>
    %c144 = arith.constant 144 : index
    %c0_5 = arith.constant 0 : index
    %5 = vector.load %arg1[%c144, %c0_5] : memref<272x128xbf16, #tpu.memory_space<vmem>>, vector<128x128xbf16>
    %c0_6 = arith.constant 0 : index
    %c0_7 = arith.constant 0 : index
    %6 = vector.load %arg2[%c0_6, %c0_7] : memref<8x128xf32, #tpu.memory_space<vmem>>, vector<8x128xf32>
    %7 = vector.extract_strided_slice %6 {offsets = [0, 0], sizes = [1, 128], strides = [1, 1]} : vector<8x128xf32> to vector<1x128xf32>
    %8 = vector.extract_strided_slice %6 {offsets = [1, 0], sizes = [1, 128], strides = [1, 1]} : vector<8x128xf32> to vector<1x128xf32>
    %9 = vector.extract_strided_slice %6 {offsets = [2, 0], sizes = [1, 128], strides = [1, 1]} : vector<8x128xf32> to vector<1x128xf32>
    %10 = vector.extract_strided_slice %6 {offsets = [3, 0], sizes = [1, 128], strides = [1, 1]} : vector<8x128xf32> to vector<1x128xf32>
    %c0_8 = arith.constant 0 : index
    %c0_9 = arith.constant 0 : index
    %11 = vector.load %arg0[%c0_8, %c0_9] : memref<16x16xf32, #tpu.memory_space<vmem>>, vector<16x16xf32>
    %12 = arith.truncf %11 : vector<16x16xf32> to vector<16x16xbf16>
    %cst = arith.constant dense<0.000000e+00> : vector<16x128xf32>
    %13 = tpu.matmul %12, %0, %cst {dimension_numbers = #tpu.dot_dimension_numbers<[1], [0], [0], [1], [0, 0, 1, 1], [], []>} : vector<16x16xbf16>, vector<16x128xbf16>, vector<16x128xf32> -> vector<16x128xf32>
    %14 = vector.broadcast %7 : vector<1x128xf32> to vector<16x128xf32>
    %15 = arith.addf %13, %14 : vector<16x128xf32>
    %cst_10 = arith.constant 0.000000e+00 : f32
    %16 = vector.broadcast %cst_10 : f32 to vector<2x32xf32>
    %17 = vector.shape_cast %8 : vector<1x128xf32> to vector<1x128xf32>
    %18 = vector.broadcast %17 : vector<1x128xf32> to vector<2x128xf32>
    %19 = vector.extract_strided_slice %15 {offsets = [0, 0], sizes = [2, 128], strides = [1, 1]} : vector<16x128xf32> to vector<2x128xf32>
    %20 = arith.truncf %16 : vector<2x32xf32> to vector<2x32xbf16>
    %cst_11 = arith.constant dense<0.000000e+00> : vector<2x128xf32>
    %21 = tpu.matmul %20, %1, %cst_11 {dimension_numbers = #tpu.dot_dimension_numbers<[1], [0], [0], [1], [0, 0, 1, 1], [], []>} : vector<2x32xbf16>, vector<32x128xbf16>, vector<2x128xf32> -> vector<2x128xf32>
    %22 = arith.addf %19, %21 : vector<2x128xf32>
    %23 = arith.negf %22 : vector<2x128xf32>
    %24 = math.exp %23 : vector<2x128xf32>
    %cst_12 = arith.constant 1.000000e+00 : f32
    %25 = vector.broadcast %cst_12 : f32 to vector<2x128xf32>
    %26 = arith.addf %25, %24 : vector<2x128xf32>
    %27 = arith.divf %25, %26 : vector<2x128xf32>
    %28 = math.tanh %22 : vector<2x128xf32>
    %29 = vector.extract_strided_slice %27 {offsets = [0, 0], sizes = [2, 32], strides = [1, 1]} : vector<2x128xf32> to vector<2x32xf32>
    %30 = vector.extract_strided_slice %27 {offsets = [0, 32], sizes = [2, 32], strides = [1, 1]} : vector<2x128xf32> to vector<2x32xf32>
    %31 = vector.extract_strided_slice %27 {offsets = [0, 96], sizes = [2, 32], strides = [1, 1]} : vector<2x128xf32> to vector<2x32xf32>
    %32 = vector.extract_strided_slice %28 {offsets = [0, 64], sizes = [2, 32], strides = [1, 1]} : vector<2x128xf32> to vector<2x32xf32>
    %33 = arith.mulf %30, %16 : vector<2x32xf32>
    %34 = arith.mulf %29, %32 : vector<2x32xf32>
    %35 = arith.addf %33, %34 : vector<2x32xf32>
    %36 = math.tanh %35 : vector<2x32xf32>
    %37 = arith.mulf %31, %36 : vector<2x32xf32>
    %38 = arith.truncf %37 : vector<2x32xf32> to vector<2x32xbf16>
    %cst_13 = arith.constant dense<0.000000e+00> : vector<2x128xf32>
    %39 = tpu.matmul %38, %2, %cst_13 {dimension_numbers = #tpu.dot_dimension_numbers<[1], [0], [0], [1], [0, 0, 1, 1], [], []>} : vector<2x32xbf16>, vector<32x128xbf16>, vector<2x128xf32> -> vector<2x128xf32>
    %40 = arith.addf %39, %18 : vector<2x128xf32>
    %41 = arith.negf %40 : vector<2x128xf32>
    %42 = math.exp %41 : vector<2x128xf32>
    %cst_14 = arith.constant 1.000000e+00 : f32
    %43 = vector.broadcast %cst_14 : f32 to vector<2x128xf32>
    %44 = arith.addf %43, %42 : vector<2x128xf32>
    %45 = arith.divf %43, %44 : vector<2x128xf32>
    %46 = math.tanh %40 : vector<2x128xf32>
    %47 = vector.extract_strided_slice %45 {offsets = [0, 0], sizes = [2, 32], strides = [1, 1]} : vector<2x128xf32> to vector<2x32xf32>
    %48 = vector.extract_strided_slice %45 {offsets = [0, 32], sizes = [2, 32], strides = [1, 1]} : vector<2x128xf32> to vector<2x32xf32>
    %49 = vector.extract_strided_slice %45 {offsets = [0, 96], sizes = [2, 32], strides = [1, 1]} : vector<2x128xf32> to vector<2x32xf32>
    %50 = vector.extract_strided_slice %46 {offsets = [0, 64], sizes = [2, 32], strides = [1, 1]} : vector<2x128xf32> to vector<2x32xf32>
    %51 = arith.mulf %48, %16 : vector<2x32xf32>
    %52 = arith.mulf %47, %50 : vector<2x32xf32>
    %53 = arith.addf %51, %52 : vector<2x32xf32>
    %54 = math.tanh %53 : vector<2x32xf32>
    %55 = arith.mulf %49, %54 : vector<2x32xf32>
    %56 = arith.truncf %55 : vector<2x32xf32> to vector<2x32xbf16>
    %cst_15 = arith.constant dense<0.000000e+00> : vector<2x128xf32>
    %57 = tpu.matmul %56, %3, %cst_15 {dimension_numbers = #tpu.dot_dimension_numbers<[1], [0], [0], [1], [0, 0, 1, 1], [], []>} : vector<2x32xbf16>, vector<32x128xbf16>, vector<2x128xf32> -> vector<2x128xf32>
    %58 = vector.broadcast %8 : vector<1x128xf32> to vector<2x128xf32>
    %59 = arith.addf %57, %58 : vector<2x128xf32>
    %60 = vector.extract_strided_slice %15 {offsets = [2, 0], sizes = [2, 128], strides = [1, 1]} : vector<16x128xf32> to vector<2x128xf32>
    %61 = arith.truncf %37 : vector<2x32xf32> to vector<2x32xbf16>
    %cst_16 = arith.constant dense<0.000000e+00> : vector<2x128xf32>
    %62 = tpu.matmul %61, %1, %cst_16 {dimension_numbers = #tpu.dot_dimension_numbers<[1], [0], [0], [1], [0, 0, 1, 1], [], []>} : vector<2x32xbf16>, vector<32x128xbf16>, vector<2x128xf32> -> vector<2x128xf32>
    %63 = arith.addf %60, %62 : vector<2x128xf32>
    %64 = arith.negf %63 : vector<2x128xf32>
    %65 = math.exp %64 : vector<2x128xf32>
    %cst_17 = arith.constant 1.000000e+00 : f32
    %66 = vector.broadcast %cst_17 : f32 to vector<2x128xf32>
    %67 = arith.addf %66, %65 : vector<2x128xf32>
    %68 = arith.divf %66, %67 : vector<2x128xf32>
    %69 = math.tanh %63 : vector<2x128xf32>
    %70 = vector.extract_strided_slice %68 {offsets = [0, 0], sizes = [2, 32], strides = [1, 1]} : vector<2x128xf32> to vector<2x32xf32>
    %71 = vector.extract_strided_slice %68 {offsets = [0, 32], sizes = [2, 32], strides = [1, 1]} : vector<2x128xf32> to vector<2x32xf32>
    %72 = vector.extract_strided_slice %68 {offsets = [0, 96], sizes = [2, 32], strides = [1, 1]} : vector<2x128xf32> to vector<2x32xf32>
    %73 = vector.extract_strided_slice %69 {offsets = [0, 64], sizes = [2, 32], strides = [1, 1]} : vector<2x128xf32> to vector<2x32xf32>
    %74 = arith.mulf %71, %35 : vector<2x32xf32>
    %75 = arith.mulf %70, %73 : vector<2x32xf32>
    %76 = arith.addf %74, %75 : vector<2x32xf32>
    %77 = math.tanh %76 : vector<2x32xf32>
    %78 = arith.mulf %72, %77 : vector<2x32xf32>
    %79 = arith.truncf %78 : vector<2x32xf32> to vector<2x32xbf16>
    %cst_18 = arith.constant dense<0.000000e+00> : vector<2x128xf32>
    %80 = tpu.matmul %79, %2, %cst_18 {dimension_numbers = #tpu.dot_dimension_numbers<[1], [0], [0], [1], [0, 0, 1, 1], [], []>} : vector<2x32xbf16>, vector<32x128xbf16>, vector<2x128xf32> -> vector<2x128xf32>
    %81 = arith.addf %80, %59 : vector<2x128xf32>
    %82 = arith.negf %81 : vector<2x128xf32>
    %83 = math.exp %82 : vector<2x128xf32>
    %cst_19 = arith.constant 1.000000e+00 : f32
    %84 = vector.broadcast %cst_19 : f32 to vector<2x128xf32>
    %85 = arith.addf %84, %83 : vector<2x128xf32>
    %86 = arith.divf %84, %85 : vector<2x128xf32>
    %87 = math.tanh %81 : vector<2x128xf32>
    %88 = vector.extract_strided_slice %86 {offsets = [0, 0], sizes = [2, 32], strides = [1, 1]} : vector<2x128xf32> to vector<2x32xf32>
    %89 = vector.extract_strided_slice %86 {offsets = [0, 32], sizes = [2, 32], strides = [1, 1]} : vector<2x128xf32> to vector<2x32xf32>
    %90 = vector.extract_strided_slice %86 {offsets = [0, 96], sizes = [2, 32], strides = [1, 1]} : vector<2x128xf32> to vector<2x32xf32>
    %91 = vector.extract_strided_slice %87 {offsets = [0, 64], sizes = [2, 32], strides = [1, 1]} : vector<2x128xf32> to vector<2x32xf32>
    %92 = arith.mulf %89, %53 : vector<2x32xf32>
    %93 = arith.mulf %88, %91 : vector<2x32xf32>
    %94 = arith.addf %92, %93 : vector<2x32xf32>
    %95 = math.tanh %94 : vector<2x32xf32>
    %96 = arith.mulf %90, %95 : vector<2x32xf32>
    %97 = arith.truncf %96 : vector<2x32xf32> to vector<2x32xbf16>
    %cst_20 = arith.constant dense<0.000000e+00> : vector<2x128xf32>
    %98 = tpu.matmul %97, %3, %cst_20 {dimension_numbers = #tpu.dot_dimension_numbers<[1], [0], [0], [1], [0, 0, 1, 1], [], []>} : vector<2x32xbf16>, vector<32x128xbf16>, vector<2x128xf32> -> vector<2x128xf32>
    %99 = vector.broadcast %8 : vector<1x128xf32> to vector<2x128xf32>
    %100 = arith.addf %98, %99 : vector<2x128xf32>
    %101 = vector.extract_strided_slice %15 {offsets = [4, 0], sizes = [2, 128], strides = [1, 1]} : vector<16x128xf32> to vector<2x128xf32>
    %102 = arith.truncf %78 : vector<2x32xf32> to vector<2x32xbf16>
    %cst_21 = arith.constant dense<0.000000e+00> : vector<2x128xf32>
    %103 = tpu.matmul %102, %1, %cst_21 {dimension_numbers = #tpu.dot_dimension_numbers<[1], [0], [0], [1], [0, 0, 1, 1], [], []>} : vector<2x32xbf16>, vector<32x128xbf16>, vector<2x128xf32> -> vector<2x128xf32>
    %104 = arith.addf %101, %103 : vector<2x128xf32>
    %105 = arith.negf %104 : vector<2x128xf32>
    %106 = math.exp %105 : vector<2x128xf32>
    %cst_22 = arith.constant 1.000000e+00 : f32
    %107 = vector.broadcast %cst_22 : f32 to vector<2x128xf32>
    %108 = arith.addf %107, %106 : vector<2x128xf32>
    %109 = arith.divf %107, %108 : vector<2x128xf32>
    %110 = math.tanh %104 : vector<2x128xf32>
    %111 = vector.extract_strided_slice %109 {offsets = [0, 0], sizes = [2, 32], strides = [1, 1]} : vector<2x128xf32> to vector<2x32xf32>
    %112 = vector.extract_strided_slice %109 {offsets = [0, 32], sizes = [2, 32], strides = [1, 1]} : vector<2x128xf32> to vector<2x32xf32>
    %113 = vector.extract_strided_slice %109 {offsets = [0, 96], sizes = [2, 32], strides = [1, 1]} : vector<2x128xf32> to vector<2x32xf32>
    %114 = vector.extract_strided_slice %110 {offsets = [0, 64], sizes = [2, 32], strides = [1, 1]} : vector<2x128xf32> to vector<2x32xf32>
    %115 = arith.mulf %112, %76 : vector<2x32xf32>
    %116 = arith.mulf %111, %114 : vector<2x32xf32>
    %117 = arith.addf %115, %116 : vector<2x32xf32>
    %118 = math.tanh %117 : vector<2x32xf32>
    %119 = arith.mulf %113, %118 : vector<2x32xf32>
    %120 = arith.truncf %119 : vector<2x32xf32> to vector<2x32xbf16>
    %cst_23 = arith.constant dense<0.000000e+00> : vector<2x128xf32>
    %121 = tpu.matmul %120, %2, %cst_23 {dimension_numbers = #tpu.dot_dimension_numbers<[1], [0], [0], [1], [0, 0, 1, 1], [], []>} : vector<2x32xbf16>, vector<32x128xbf16>, vector<2x128xf32> -> vector<2x128xf32>
    %122 = arith.addf %121, %100 : vector<2x128xf32>
    %123 = arith.negf %122 : vector<2x128xf32>
    %124 = math.exp %123 : vector<2x128xf32>
    %cst_24 = arith.constant 1.000000e+00 : f32
    %125 = vector.broadcast %cst_24 : f32 to vector<2x128xf32>
    %126 = arith.addf %125, %124 : vector<2x128xf32>
    %127 = arith.divf %125, %126 : vector<2x128xf32>
    %128 = math.tanh %122 : vector<2x128xf32>
    %129 = vector.extract_strided_slice %127 {offsets = [0, 0], sizes = [2, 32], strides = [1, 1]} : vector<2x128xf32> to vector<2x32xf32>
    %130 = vector.extract_strided_slice %127 {offsets = [0, 32], sizes = [2, 32], strides = [1, 1]} : vector<2x128xf32> to vector<2x32xf32>
    %131 = vector.extract_strided_slice %127 {offsets = [0, 96], sizes = [2, 32], strides = [1, 1]} : vector<2x128xf32> to vector<2x32xf32>
    %132 = vector.extract_strided_slice %128 {offsets = [0, 64], sizes = [2, 32], strides = [1, 1]} : vector<2x128xf32> to vector<2x32xf32>
    %133 = arith.mulf %130, %94 : vector<2x32xf32>
    %134 = arith.mulf %129, %132 : vector<2x32xf32>
    %135 = arith.addf %133, %134 : vector<2x32xf32>
    %136 = math.tanh %135 : vector<2x32xf32>
    %137 = arith.mulf %131, %136 : vector<2x32xf32>
    %138 = arith.truncf %137 : vector<2x32xf32> to vector<2x32xbf16>
    %cst_25 = arith.constant dense<0.000000e+00> : vector<2x128xf32>
    %139 = tpu.matmul %138, %3, %cst_25 {dimension_numbers = #tpu.dot_dimension_numbers<[1], [0], [0], [1], [0, 0, 1, 1], [], []>} : vector<2x32xbf16>, vector<32x128xbf16>, vector<2x128xf32> -> vector<2x128xf32>
    %140 = vector.broadcast %8 : vector<1x128xf32> to vector<2x128xf32>
    %141 = arith.addf %139, %140 : vector<2x128xf32>
    %142 = vector.extract_strided_slice %15 {offsets = [6, 0], sizes = [2, 128], strides = [1, 1]} : vector<16x128xf32> to vector<2x128xf32>
    %143 = arith.truncf %119 : vector<2x32xf32> to vector<2x32xbf16>
    %cst_26 = arith.constant dense<0.000000e+00> : vector<2x128xf32>
    %144 = tpu.matmul %143, %1, %cst_26 {dimension_numbers = #tpu.dot_dimension_numbers<[1], [0], [0], [1], [0, 0, 1, 1], [], []>} : vector<2x32xbf16>, vector<32x128xbf16>, vector<2x128xf32> -> vector<2x128xf32>
    %145 = arith.addf %142, %144 : vector<2x128xf32>
    %146 = arith.negf %145 : vector<2x128xf32>
    %147 = math.exp %146 : vector<2x128xf32>
    %cst_27 = arith.constant 1.000000e+00 : f32
    %148 = vector.broadcast %cst_27 : f32 to vector<2x128xf32>
    %149 = arith.addf %148, %147 : vector<2x128xf32>
    %150 = arith.divf %148, %149 : vector<2x128xf32>
    %151 = math.tanh %145 : vector<2x128xf32>
    %152 = vector.extract_strided_slice %150 {offsets = [0, 0], sizes = [2, 32], strides = [1, 1]} : vector<2x128xf32> to vector<2x32xf32>
    %153 = vector.extract_strided_slice %150 {offsets = [0, 32], sizes = [2, 32], strides = [1, 1]} : vector<2x128xf32> to vector<2x32xf32>
    %154 = vector.extract_strided_slice %150 {offsets = [0, 96], sizes = [2, 32], strides = [1, 1]} : vector<2x128xf32> to vector<2x32xf32>
    %155 = vector.extract_strided_slice %151 {offsets = [0, 64], sizes = [2, 32], strides = [1, 1]} : vector<2x128xf32> to vector<2x32xf32>
    %156 = arith.mulf %153, %117 : vector<2x32xf32>
    %157 = arith.mulf %152, %155 : vector<2x32xf32>
    %158 = arith.addf %156, %157 : vector<2x32xf32>
    %159 = math.tanh %158 : vector<2x32xf32>
    %160 = arith.mulf %154, %159 : vector<2x32xf32>
    %161 = arith.truncf %160 : vector<2x32xf32> to vector<2x32xbf16>
    %cst_28 = arith.constant dense<0.000000e+00> : vector<2x128xf32>
    %162 = tpu.matmul %161, %2, %cst_28 {dimension_numbers = #tpu.dot_dimension_numbers<[1], [0], [0], [1], [0, 0, 1, 1], [], []>} : vector<2x32xbf16>, vector<32x128xbf16>, vector<2x128xf32> -> vector<2x128xf32>
    %163 = arith.addf %162, %141 : vector<2x128xf32>
    %164 = arith.negf %163 : vector<2x128xf32>
    %165 = math.exp %164 : vector<2x128xf32>
    %cst_29 = arith.constant 1.000000e+00 : f32
    %166 = vector.broadcast %cst_29 : f32 to vector<2x128xf32>
    %167 = arith.addf %166, %165 : vector<2x128xf32>
    %168 = arith.divf %166, %167 : vector<2x128xf32>
    %169 = math.tanh %163 : vector<2x128xf32>
    %170 = vector.extract_strided_slice %168 {offsets = [0, 0], sizes = [2, 32], strides = [1, 1]} : vector<2x128xf32> to vector<2x32xf32>
    %171 = vector.extract_strided_slice %168 {offsets = [0, 32], sizes = [2, 32], strides = [1, 1]} : vector<2x128xf32> to vector<2x32xf32>
    %172 = vector.extract_strided_slice %168 {offsets = [0, 96], sizes = [2, 32], strides = [1, 1]} : vector<2x128xf32> to vector<2x32xf32>
    %173 = vector.extract_strided_slice %169 {offsets = [0, 64], sizes = [2, 32], strides = [1, 1]} : vector<2x128xf32> to vector<2x32xf32>
    %174 = arith.mulf %171, %135 : vector<2x32xf32>
    %175 = arith.mulf %170, %173 : vector<2x32xf32>
    %176 = arith.addf %174, %175 : vector<2x32xf32>
    %177 = math.tanh %176 : vector<2x32xf32>
    %178 = arith.mulf %172, %177 : vector<2x32xf32>
    %179 = arith.truncf %178 : vector<2x32xf32> to vector<2x32xbf16>
    %cst_30 = arith.constant dense<0.000000e+00> : vector<2x128xf32>
    %180 = tpu.matmul %179, %3, %cst_30 {dimension_numbers = #tpu.dot_dimension_numbers<[1], [0], [0], [1], [0, 0, 1, 1], [], []>} : vector<2x32xbf16>, vector<32x128xbf16>, vector<2x128xf32> -> vector<2x128xf32>
    %181 = vector.broadcast %8 : vector<1x128xf32> to vector<2x128xf32>
    %182 = arith.addf %180, %181 : vector<2x128xf32>
    %183 = vector.extract_strided_slice %15 {offsets = [8, 0], sizes = [2, 128], strides = [1, 1]} : vector<16x128xf32> to vector<2x128xf32>
    %184 = arith.truncf %160 : vector<2x32xf32> to vector<2x32xbf16>
    %cst_31 = arith.constant dense<0.000000e+00> : vector<2x128xf32>
    %185 = tpu.matmul %184, %1, %cst_31 {dimension_numbers = #tpu.dot_dimension_numbers<[1], [0], [0], [1], [0, 0, 1, 1], [], []>} : vector<2x32xbf16>, vector<32x128xbf16>, vector<2x128xf32> -> vector<2x128xf32>
    %186 = arith.addf %183, %185 : vector<2x128xf32>
    %187 = arith.negf %186 : vector<2x128xf32>
    %188 = math.exp %187 : vector<2x128xf32>
    %cst_32 = arith.constant 1.000000e+00 : f32
    %189 = vector.broadcast %cst_32 : f32 to vector<2x128xf32>
    %190 = arith.addf %189, %188 : vector<2x128xf32>
    %191 = arith.divf %189, %190 : vector<2x128xf32>
    %192 = math.tanh %186 : vector<2x128xf32>
    %193 = vector.extract_strided_slice %191 {offsets = [0, 0], sizes = [2, 32], strides = [1, 1]} : vector<2x128xf32> to vector<2x32xf32>
    %194 = vector.extract_strided_slice %191 {offsets = [0, 32], sizes = [2, 32], strides = [1, 1]} : vector<2x128xf32> to vector<2x32xf32>
    %195 = vector.extract_strided_slice %191 {offsets = [0, 96], sizes = [2, 32], strides = [1, 1]} : vector<2x128xf32> to vector<2x32xf32>
    %196 = vector.extract_strided_slice %192 {offsets = [0, 64], sizes = [2, 32], strides = [1, 1]} : vector<2x128xf32> to vector<2x32xf32>
    %197 = arith.mulf %194, %158 : vector<2x32xf32>
    %198 = arith.mulf %193, %196 : vector<2x32xf32>
    %199 = arith.addf %197, %198 : vector<2x32xf32>
    %200 = math.tanh %199 : vector<2x32xf32>
    %201 = arith.mulf %195, %200 : vector<2x32xf32>
    %202 = arith.truncf %201 : vector<2x32xf32> to vector<2x32xbf16>
    %cst_33 = arith.constant dense<0.000000e+00> : vector<2x128xf32>
    %203 = tpu.matmul %202, %2, %cst_33 {dimension_numbers = #tpu.dot_dimension_numbers<[1], [0], [0], [1], [0, 0, 1, 1], [], []>} : vector<2x32xbf16>, vector<32x128xbf16>, vector<2x128xf32> -> vector<2x128xf32>
    %204 = arith.addf %203, %182 : vector<2x128xf32>
    %205 = arith.negf %204 : vector<2x128xf32>
    %206 = math.exp %205 : vector<2x128xf32>
    %cst_34 = arith.constant 1.000000e+00 : f32
    %207 = vector.broadcast %cst_34 : f32 to vector<2x128xf32>
    %208 = arith.addf %207, %206 : vector<2x128xf32>
    %209 = arith.divf %207, %208 : vector<2x128xf32>
    %210 = math.tanh %204 : vector<2x128xf32>
    %211 = vector.extract_strided_slice %209 {offsets = [0, 0], sizes = [2, 32], strides = [1, 1]} : vector<2x128xf32> to vector<2x32xf32>
    %212 = vector.extract_strided_slice %209 {offsets = [0, 32], sizes = [2, 32], strides = [1, 1]} : vector<2x128xf32> to vector<2x32xf32>
    %213 = vector.extract_strided_slice %209 {offsets = [0, 96], sizes = [2, 32], strides = [1, 1]} : vector<2x128xf32> to vector<2x32xf32>
    %214 = vector.extract_strided_slice %210 {offsets = [0, 64], sizes = [2, 32], strides = [1, 1]} : vector<2x128xf32> to vector<2x32xf32>
    %215 = arith.mulf %212, %176 : vector<2x32xf32>
    %216 = arith.mulf %211, %214 : vector<2x32xf32>
    %217 = arith.addf %215, %216 : vector<2x32xf32>
    %218 = math.tanh %217 : vector<2x32xf32>
    %219 = arith.mulf %213, %218 : vector<2x32xf32>
    %220 = arith.truncf %219 : vector<2x32xf32> to vector<2x32xbf16>
    %cst_35 = arith.constant dense<0.000000e+00> : vector<2x128xf32>
    %221 = tpu.matmul %220, %3, %cst_35 {dimension_numbers = #tpu.dot_dimension_numbers<[1], [0], [0], [1], [0, 0, 1, 1], [], []>} : vector<2x32xbf16>, vector<32x128xbf16>, vector<2x128xf32> -> vector<2x128xf32>
    %222 = vector.broadcast %8 : vector<1x128xf32> to vector<2x128xf32>
    %223 = arith.addf %221, %222 : vector<2x128xf32>
    %224 = vector.extract_strided_slice %15 {offsets = [10, 0], sizes = [2, 128], strides = [1, 1]} : vector<16x128xf32> to vector<2x128xf32>
    %225 = arith.truncf %201 : vector<2x32xf32> to vector<2x32xbf16>
    %cst_36 = arith.constant dense<0.000000e+00> : vector<2x128xf32>
    %226 = tpu.matmul %225, %1, %cst_36 {dimension_numbers = #tpu.dot_dimension_numbers<[1], [0], [0], [1], [0, 0, 1, 1], [], []>} : vector<2x32xbf16>, vector<32x128xbf16>, vector<2x128xf32> -> vector<2x128xf32>
    %227 = arith.addf %224, %226 : vector<2x128xf32>
    %228 = arith.negf %227 : vector<2x128xf32>
    %229 = math.exp %228 : vector<2x128xf32>
    %cst_37 = arith.constant 1.000000e+00 : f32
    %230 = vector.broadcast %cst_37 : f32 to vector<2x128xf32>
    %231 = arith.addf %230, %229 : vector<2x128xf32>
    %232 = arith.divf %230, %231 : vector<2x128xf32>
    %233 = math.tanh %227 : vector<2x128xf32>
    %234 = vector.extract_strided_slice %232 {offsets = [0, 0], sizes = [2, 32], strides = [1, 1]} : vector<2x128xf32> to vector<2x32xf32>
    %235 = vector.extract_strided_slice %232 {offsets = [0, 32], sizes = [2, 32], strides = [1, 1]} : vector<2x128xf32> to vector<2x32xf32>
    %236 = vector.extract_strided_slice %232 {offsets = [0, 96], sizes = [2, 32], strides = [1, 1]} : vector<2x128xf32> to vector<2x32xf32>
    %237 = vector.extract_strided_slice %233 {offsets = [0, 64], sizes = [2, 32], strides = [1, 1]} : vector<2x128xf32> to vector<2x32xf32>
    %238 = arith.mulf %235, %199 : vector<2x32xf32>
    %239 = arith.mulf %234, %237 : vector<2x32xf32>
    %240 = arith.addf %238, %239 : vector<2x32xf32>
    %241 = math.tanh %240 : vector<2x32xf32>
    %242 = arith.mulf %236, %241 : vector<2x32xf32>
    %243 = arith.truncf %242 : vector<2x32xf32> to vector<2x32xbf16>
    %cst_38 = arith.constant dense<0.000000e+00> : vector<2x128xf32>
    %244 = tpu.matmul %243, %2, %cst_38 {dimension_numbers = #tpu.dot_dimension_numbers<[1], [0], [0], [1], [0, 0, 1, 1], [], []>} : vector<2x32xbf16>, vector<32x128xbf16>, vector<2x128xf32> -> vector<2x128xf32>
    %245 = arith.addf %244, %223 : vector<2x128xf32>
    %246 = arith.negf %245 : vector<2x128xf32>
    %247 = math.exp %246 : vector<2x128xf32>
    %cst_39 = arith.constant 1.000000e+00 : f32
    %248 = vector.broadcast %cst_39 : f32 to vector<2x128xf32>
    %249 = arith.addf %248, %247 : vector<2x128xf32>
    %250 = arith.divf %248, %249 : vector<2x128xf32>
    %251 = math.tanh %245 : vector<2x128xf32>
    %252 = vector.extract_strided_slice %250 {offsets = [0, 0], sizes = [2, 32], strides = [1, 1]} : vector<2x128xf32> to vector<2x32xf32>
    %253 = vector.extract_strided_slice %250 {offsets = [0, 32], sizes = [2, 32], strides = [1, 1]} : vector<2x128xf32> to vector<2x32xf32>
    %254 = vector.extract_strided_slice %250 {offsets = [0, 96], sizes = [2, 32], strides = [1, 1]} : vector<2x128xf32> to vector<2x32xf32>
    %255 = vector.extract_strided_slice %251 {offsets = [0, 64], sizes = [2, 32], strides = [1, 1]} : vector<2x128xf32> to vector<2x32xf32>
    %256 = arith.mulf %253, %217 : vector<2x32xf32>
    %257 = arith.mulf %252, %255 : vector<2x32xf32>
    %258 = arith.addf %256, %257 : vector<2x32xf32>
    %259 = math.tanh %258 : vector<2x32xf32>
    %260 = arith.mulf %254, %259 : vector<2x32xf32>
    %261 = arith.truncf %260 : vector<2x32xf32> to vector<2x32xbf16>
    %cst_40 = arith.constant dense<0.000000e+00> : vector<2x128xf32>
    %262 = tpu.matmul %261, %3, %cst_40 {dimension_numbers = #tpu.dot_dimension_numbers<[1], [0], [0], [1], [0, 0, 1, 1], [], []>} : vector<2x32xbf16>, vector<32x128xbf16>, vector<2x128xf32> -> vector<2x128xf32>
    %263 = vector.broadcast %8 : vector<1x128xf32> to vector<2x128xf32>
    %264 = arith.addf %262, %263 : vector<2x128xf32>
    %265 = vector.extract_strided_slice %15 {offsets = [12, 0], sizes = [2, 128], strides = [1, 1]} : vector<16x128xf32> to vector<2x128xf32>
    %266 = arith.truncf %242 : vector<2x32xf32> to vector<2x32xbf16>
    %cst_41 = arith.constant dense<0.000000e+00> : vector<2x128xf32>
    %267 = tpu.matmul %266, %1, %cst_41 {dimension_numbers = #tpu.dot_dimension_numbers<[1], [0], [0], [1], [0, 0, 1, 1], [], []>} : vector<2x32xbf16>, vector<32x128xbf16>, vector<2x128xf32> -> vector<2x128xf32>
    %268 = arith.addf %265, %267 : vector<2x128xf32>
    %269 = arith.negf %268 : vector<2x128xf32>
    %270 = math.exp %269 : vector<2x128xf32>
    %cst_42 = arith.constant 1.000000e+00 : f32
    %271 = vector.broadcast %cst_42 : f32 to vector<2x128xf32>
    %272 = arith.addf %271, %270 : vector<2x128xf32>
    %273 = arith.divf %271, %272 : vector<2x128xf32>
    %274 = math.tanh %268 : vector<2x128xf32>
    %275 = vector.extract_strided_slice %273 {offsets = [0, 0], sizes = [2, 32], strides = [1, 1]} : vector<2x128xf32> to vector<2x32xf32>
    %276 = vector.extract_strided_slice %273 {offsets = [0, 32], sizes = [2, 32], strides = [1, 1]} : vector<2x128xf32> to vector<2x32xf32>
    %277 = vector.extract_strided_slice %273 {offsets = [0, 96], sizes = [2, 32], strides = [1, 1]} : vector<2x128xf32> to vector<2x32xf32>
    %278 = vector.extract_strided_slice %274 {offsets = [0, 64], sizes = [2, 32], strides = [1, 1]} : vector<2x128xf32> to vector<2x32xf32>
    %279 = arith.mulf %276, %240 : vector<2x32xf32>
    %280 = arith.mulf %275, %278 : vector<2x32xf32>
    %281 = arith.addf %279, %280 : vector<2x32xf32>
    %282 = math.tanh %281 : vector<2x32xf32>
    %283 = arith.mulf %277, %282 : vector<2x32xf32>
    %284 = arith.truncf %283 : vector<2x32xf32> to vector<2x32xbf16>
    %cst_43 = arith.constant dense<0.000000e+00> : vector<2x128xf32>
    %285 = tpu.matmul %284, %2, %cst_43 {dimension_numbers = #tpu.dot_dimension_numbers<[1], [0], [0], [1], [0, 0, 1, 1], [], []>} : vector<2x32xbf16>, vector<32x128xbf16>, vector<2x128xf32> -> vector<2x128xf32>
    %286 = arith.addf %285, %264 : vector<2x128xf32>
    %287 = arith.negf %286 : vector<2x128xf32>
    %288 = math.exp %287 : vector<2x128xf32>
    %cst_44 = arith.constant 1.000000e+00 : f32
    %289 = vector.broadcast %cst_44 : f32 to vector<2x128xf32>
    %290 = arith.addf %289, %288 : vector<2x128xf32>
    %291 = arith.divf %289, %290 : vector<2x128xf32>
    %292 = math.tanh %286 : vector<2x128xf32>
    %293 = vector.extract_strided_slice %291 {offsets = [0, 0], sizes = [2, 32], strides = [1, 1]} : vector<2x128xf32> to vector<2x32xf32>
    %294 = vector.extract_strided_slice %291 {offsets = [0, 32], sizes = [2, 32], strides = [1, 1]} : vector<2x128xf32> to vector<2x32xf32>
    %295 = vector.extract_strided_slice %291 {offsets = [0, 96], sizes = [2, 32], strides = [1, 1]} : vector<2x128xf32> to vector<2x32xf32>
    %296 = vector.extract_strided_slice %292 {offsets = [0, 64], sizes = [2, 32], strides = [1, 1]} : vector<2x128xf32> to vector<2x32xf32>
    %297 = arith.mulf %294, %258 : vector<2x32xf32>
    %298 = arith.mulf %293, %296 : vector<2x32xf32>
    %299 = arith.addf %297, %298 : vector<2x32xf32>
    %300 = math.tanh %299 : vector<2x32xf32>
    %301 = arith.mulf %295, %300 : vector<2x32xf32>
    %302 = arith.truncf %301 : vector<2x32xf32> to vector<2x32xbf16>
    %cst_45 = arith.constant dense<0.000000e+00> : vector<2x128xf32>
    %303 = tpu.matmul %302, %3, %cst_45 {dimension_numbers = #tpu.dot_dimension_numbers<[1], [0], [0], [1], [0, 0, 1, 1], [], []>} : vector<2x32xbf16>, vector<32x128xbf16>, vector<2x128xf32> -> vector<2x128xf32>
    %304 = vector.broadcast %8 : vector<1x128xf32> to vector<2x128xf32>
    %305 = arith.addf %303, %304 : vector<2x128xf32>
    %306 = vector.extract_strided_slice %15 {offsets = [14, 0], sizes = [2, 128], strides = [1, 1]} : vector<16x128xf32> to vector<2x128xf32>
    %307 = arith.truncf %283 : vector<2x32xf32> to vector<2x32xbf16>
    %cst_46 = arith.constant dense<0.000000e+00> : vector<2x128xf32>
    %308 = tpu.matmul %307, %1, %cst_46 {dimension_numbers = #tpu.dot_dimension_numbers<[1], [0], [0], [1], [0, 0, 1, 1], [], []>} : vector<2x32xbf16>, vector<32x128xbf16>, vector<2x128xf32> -> vector<2x128xf32>
    %309 = arith.addf %306, %308 : vector<2x128xf32>
    %310 = arith.negf %309 : vector<2x128xf32>
    %311 = math.exp %310 : vector<2x128xf32>
    %cst_47 = arith.constant 1.000000e+00 : f32
    %312 = vector.broadcast %cst_47 : f32 to vector<2x128xf32>
    %313 = arith.addf %312, %311 : vector<2x128xf32>
    %314 = arith.divf %312, %313 : vector<2x128xf32>
    %315 = math.tanh %309 : vector<2x128xf32>
    %316 = vector.extract_strided_slice %314 {offsets = [0, 0], sizes = [2, 32], strides = [1, 1]} : vector<2x128xf32> to vector<2x32xf32>
    %317 = vector.extract_strided_slice %314 {offsets = [0, 32], sizes = [2, 32], strides = [1, 1]} : vector<2x128xf32> to vector<2x32xf32>
    %318 = vector.extract_strided_slice %314 {offsets = [0, 96], sizes = [2, 32], strides = [1, 1]} : vector<2x128xf32> to vector<2x32xf32>
    %319 = vector.extract_strided_slice %315 {offsets = [0, 64], sizes = [2, 32], strides = [1, 1]} : vector<2x128xf32> to vector<2x32xf32>
    %320 = arith.mulf %317, %281 : vector<2x32xf32>
    %321 = arith.mulf %316, %319 : vector<2x32xf32>
    %322 = arith.addf %320, %321 : vector<2x32xf32>
    %323 = math.tanh %322 : vector<2x32xf32>
    %324 = arith.mulf %318, %323 : vector<2x32xf32>
    %325 = arith.truncf %324 : vector<2x32xf32> to vector<2x32xbf16>
    %cst_48 = arith.constant dense<0.000000e+00> : vector<2x128xf32>
    %326 = tpu.matmul %325, %2, %cst_48 {dimension_numbers = #tpu.dot_dimension_numbers<[1], [0], [0], [1], [0, 0, 1, 1], [], []>} : vector<2x32xbf16>, vector<32x128xbf16>, vector<2x128xf32> -> vector<2x128xf32>
    %327 = arith.addf %326, %305 : vector<2x128xf32>
    %328 = arith.negf %327 : vector<2x128xf32>
    %329 = math.exp %328 : vector<2x128xf32>
    %cst_49 = arith.constant 1.000000e+00 : f32
    %330 = vector.broadcast %cst_49 : f32 to vector<2x128xf32>
    %331 = arith.addf %330, %329 : vector<2x128xf32>
    %332 = arith.divf %330, %331 : vector<2x128xf32>
    %333 = math.tanh %327 : vector<2x128xf32>
    %334 = vector.extract_strided_slice %332 {offsets = [0, 0], sizes = [2, 32], strides = [1, 1]} : vector<2x128xf32> to vector<2x32xf32>
    %335 = vector.extract_strided_slice %332 {offsets = [0, 32], sizes = [2, 32], strides = [1, 1]} : vector<2x128xf32> to vector<2x32xf32>
    %336 = vector.extract_strided_slice %332 {offsets = [0, 96], sizes = [2, 32], strides = [1, 1]} : vector<2x128xf32> to vector<2x32xf32>
    %337 = vector.extract_strided_slice %333 {offsets = [0, 64], sizes = [2, 32], strides = [1, 1]} : vector<2x128xf32> to vector<2x32xf32>
    %338 = arith.mulf %335, %299 : vector<2x32xf32>
    %339 = arith.mulf %334, %337 : vector<2x32xf32>
    %340 = arith.addf %338, %339 : vector<2x32xf32>
    %341 = math.tanh %340 : vector<2x32xf32>
    %342 = arith.mulf %336, %341 : vector<2x32xf32>
    %343 = arith.truncf %342 : vector<2x32xf32> to vector<2x32xbf16>
    %cst_50 = arith.constant dense<0.000000e+00> : vector<2x128xf32>
    %344 = tpu.matmul %343, %4, %cst_50 {dimension_numbers = #tpu.dot_dimension_numbers<[1], [0], [0], [1], [0, 0, 1, 1], [], []>} : vector<2x32xbf16>, vector<32x128xbf16>, vector<2x128xf32> -> vector<2x128xf32>
    %345 = vector.broadcast %9 : vector<1x128xf32> to vector<2x128xf32>
    %346 = arith.addf %344, %345 : vector<2x128xf32>
    %cst_51 = arith.constant 0.000000e+00 : f32
    %347 = vector.broadcast %cst_51 : f32 to vector<2x128xf32>
    %348 = arith.cmpf ogt, %346, %347 : vector<2x128xf32>
    %cst_52 = arith.constant 0.00999999977 : f32
    %349 = vector.broadcast %cst_52 : f32 to vector<2x128xf32>
    %350 = arith.mulf %349, %346 : vector<2x128xf32>
    %351 = arith.select %348, %346, %350 : vector<2x128xi1>, vector<2x128xf32>
    %352 = arith.truncf %351 : vector<2x128xf32> to vector<2x128xbf16>
    %cst_53 = arith.constant dense<0.000000e+00> : vector<2x128xf32>
    %353 = tpu.matmul %352, %5, %cst_53 {dimension_numbers = #tpu.dot_dimension_numbers<[1], [0], [0], [1], [0, 0, 1, 1], [], []>} : vector<2x128xbf16>, vector<128x128xbf16>, vector<2x128xf32> -> vector<2x128xf32>
    %354 = vector.broadcast %10 : vector<1x128xf32> to vector<2x128xf32>
    %355 = arith.addf %353, %354 : vector<2x128xf32>
    %c0_54 = arith.constant 0 : index
    %c0_55 = arith.constant 0 : index
    %356 = vector.load %arg3[%c0_54, %c0_55] : memref<2x128xf32, #tpu.memory_space<vmem>>, vector<2x128xf32>
    tpu.vector_store %arg3[%c0_54, %c0_55], %355 {strides = array<i32>} : memref<2x128xf32, #tpu.memory_space<vmem>>, vector<2x128xf32>,
    return
  }
}

</mosaic_0001>

<llo_original>
// kernel: lstm_forward.1
$region0: #{lstm_forward.1}
  #allocation0 [shape = 'u32[]', space=smem, size = 0x4, offset = 0x4, fixed_abs, tag = 'smem constant byte address 0x4 - core index']
  #allocation1 [shape = 'u32[144,128]{1,0:T(1,128)}', space=vmem, size = 0x12000, scoped, tag = 'internal scratch']
  %s0 = inlined_call_operand.vmem [shape: f32[16,16], index: 0, kind: input, shape index: {}]
  %s1 = inlined_call_operand.hbm [shape: bf16[272,128], index: 1, kind: input, shape index: {}]
  %s2 = inlined_call_operand.vmem [shape: f32[8,128], index: 2, kind: input, shape index: {}]
  %s3 = inlined_call_operand.vmem [shape: f32[2,128], index: 3, kind: output, shape index: {}]
  %s4 = sld [smem:[#allocation0]]
  $region26: #{lstm_forward.1} parent=0
    _
  %s6 = ssub.s32 1, %s4
  %s7 = scalar_select 0, %s6, %s4
  $region1: #{lstm_forward.1} parent=0
    #allocation2 [shape = 'u8[69632]{0}', space=vmem, size = 0x11000, scoped, tag = 'input window, operand 1, single buffered']
    #allocation3 [shape = 's32[1]{0}', space=sflag, size = 0x4, scoped, tag = 'scoped memory for lstm_forward.1']
    %8 = vsyncpa [#allocation3], 0
    // Predicated region
    $region2: #{lstm_forward.1} parent=1 // pred_check
      _
    $region3: #{lstm_forward.1} parent=1 // pred_check_branch
      %10 = sbr.rel (0) target = $region5
    $region4: #{lstm_forward.1} parent=1 // pred_region
      _
    $region5: #{lstm_forward.1} parent=1 // pred_fallthru
      _
    // Predicated region
    $region6: #{lstm_forward.1} parent=1 // pred_check
      _
    $region7: #{lstm_forward.1} parent=1 // pred_check_branch
      %12 = sbr.rel (0) target = $region9
    $region8: #{lstm_forward.1} parent=1 // pred_region
      %s14 = ssub.s32 2176, 2176
      %15 = vsyncadd [#allocation3], %s14
      %s16 = sshll.u32 [#allocation2], 4
      %s17 = int_to_ptr.vmem [resolvable:$true] %s16
      %22 = dma.hbm_to_vmem [thread:$0]  %s1, 2176, %s17, [#allocation3], 64, 64, 4
    $region9: #{lstm_forward.1} parent=1 // pred_fallthru
      _
    // Predicated region
    $region10: #{lstm_forward.1} parent=1 // pred_check
      _
    $region11: #{lstm_forward.1} parent=1 // pred_check_branch
      %24 = sbr.rel (0) target = $region13
    $region12: #{lstm_forward.1} parent=1 // pred_region
      _
    $region13: #{lstm_forward.1} parent=1 // pred_fallthru
      _
    // Predicated region
    $region14: #{lstm_forward.1} parent=1 // pred_check
      _
    $region15: #{lstm_forward.1} parent=1 // pred_check_branch
      %26 = sbr.rel (0) target = $region17
    $region16: #{lstm_forward.1} parent=1 // pred_region
      %27 = dma.done [#allocation3], 2176
    $region17: #{lstm_forward.1} parent=1 // pred_fallthru
      _
    %v29 = vld [vmem:[#allocation2] sm:$0xf]
    %v30 = vld [vmem:[#allocation2 + $0x4] sm:$0xf]
    %v31 = vld [vmem:[#allocation2 + $0x8] sm:$0xf]
    %v32 = vld [vmem:[#allocation2 + $0xc] sm:$0xf]
    %v33 = vld [vmem:[#allocation2 + $0x10] sm:$0xf]
    %v34 = vld [vmem:[#allocation2 + $0x14] sm:$0xf]
    %v35 = vld [vmem:[#allocation2 + $0x18] sm:$0xf]
    %v36 = vld [vmem:[#allocation2 + $0x1c] sm:$0xf]
    %v37 = vld [vmem:[#allocation2 + $0x20] sm:$0xf]
    %v38 = vld [vmem:[#allocation2 + $0x24] sm:$0xf]
    %v39 = vld [vmem:[#allocation2 + $0x28] sm:$0xf]
    %v40 = vld [vmem:[#allocation2 + $0x2c] sm:$0xf]
    %v41 = vld [vmem:[#allocation2 + $0x30] sm:$0xf]
    %v42 = vld [vmem:[#allocation2 + $0x34] sm:$0xf]
    %v43 = vld [vmem:[#allocation2 + $0x38] sm:$0xf]
    %v44 = vld [vmem:[#allocation2 + $0x3c] sm:$0xf]
    %v45 = vld [vmem:[#allocation2 + $0x40] sm:$0xf]
    %v46 = vld [vmem:[#allocation2 + $0x44] sm:$0xf]
    %v47 = vld [vmem:[#allocation2 + $0x48] sm:$0xf]
    %v48 = vld [vmem:[#allocation2 + $0x4c] sm:$0xf]
    %v49 = vld [vmem:[#allocation2 + $0x50] sm:$0xf]
    %v50 = vld [vmem:[#allocation2 + $0x54] sm:$0xf]
    %v51 = vld [vmem:[#allocation2 + $0x58] sm:$0xf]
    %v52 = vld [vmem:[#allocation2 + $0x5c] sm:$0xf]
    %v53 = vld [vmem:[#allocation2 + $0x60] sm:$0xf]
    %v54 = vld [vmem:[#allocation2 + $0x64] sm:$0xf]
    %v55 = vld [vmem:[#allocation2 + $0x68] sm:$0xf]
    %v56 = vld [vmem:[#allocation2 + $0x6c] sm:$0xf]
    %v57 = vld [vmem:[#allocation2 + $0x70] sm:$0xf]
    %v58 = vld [vmem:[#allocation2 + $0x74] sm:$0xf]
    %v59 = vld [vmem:[#allocation2 + $0x78] sm:$0xf]
    %v60 = vld [vmem:[#allocation2 + $0x7c] sm:$0xf]
    %v61 = vld [vmem:[#allocation2 + $0x80] sm:$0xf]
    %v62 = vld [vmem:[#allocation2 + $0x84] sm:$0xf]
    %v63 = vld [vmem:[%s2] sm:$0xff]
    %v64 = vld [vmem:[%s0] sm:$0xff]
    %v65 = vld [vmem:[%s0 + $0x8] sm:$0xff]
    %v66 = vpack.c.bf16 %v65, %v64
    %v67 = vlaneseq
    %v68 = vshrl.u32 %v67, 7
    %v69 = vsub.s32 0, %v68
    %v70 = vrot.slane %v63, %v69
    %v73 = vunpack.c.l.b16 %v29
    %v74 = vunpack.c.l.b16 %v30
    %v75 = vpack.c.b16 %v74, %v73
    %vm77 = vcmask 130048
    %v79 = vsel %vm77, %v66, 0
    %81 = vmatprep.subr.bf16.mxu0 0
    %82 = vmatpush1.bf16.msra.mxu0 %v75
    %83 = vmatprep.subr.bf16.mxu0 0
    %84 = vmatpush1.bf16.msra.mxu0 0
    %85 = vmatprep.subr.bf16.mxu0 0
    %86 = vmatpush1.bf16.msra.mxu0 0
    %87 = vmatprep.subr.bf16.mxu0 0
    %88 = vmatpush1.bf16.msra.mxu0 0
    %89 = vmatprep.subr.bf16.mxu0 0
    %90 = vmatpush1.bf16.msra.mxu0 0
    %91 = vmatprep.subr.bf16.mxu0 0
    %92 = vmatpush1.bf16.msra.mxu0 0
    %93 = vmatprep.subr.bf16.mxu0 0
    %94 = vmatpush1.bf16.msra.mxu0 0
    %95 = vmatprep.subr.bf16.mxu0 0
    %96 = vmatpush1.bf16.msra.mxu0 0
    %97 = vmatprep.subr.bf16.mxu0 0
    %98 = vmatpush1.bf16.msra.mxu0 0
    %99 = vmatprep.subr.bf16.mxu0 0
    %100 = vmatpush1.bf16.msra.mxu0 0
    %101 = vmatprep.subr.bf16.mxu0 0
    %102 = vmatpush1.bf16.msra.mxu0 0
    %103 = vmatprep.subr.bf16.mxu0 0
    %104 = vmatpush1.bf16.msra.mxu0 0
    %105 = vmatprep.subr.bf16.mxu0 0
    %106 = vmatpush1.bf16.msra.mxu0 0
    %107 = vmatprep.subr.bf16.mxu0 0
    %108 = vmatpush1.bf16.msra.mxu0 0
    %109 = vmatprep.subr.bf16.mxu0 0
    %110 = vmatpush1.bf16.msra.mxu0 0
    %111 = vmatprep.subr.bf16.mxu0 0
    %112 = vmatpush1.bf16.msra.mxu0 0
    %113 = vmatprep.mubr.bf16.mxu0 0
    %114 = vmatmul.mubr.bf16.gmra.mrb[0].mxu0 %v79
    %v115 = vpop.f32.mrb[0].mxu0
    %v116 = vadd.f32 %v70, %v115
    %v117 = vpop.f32.mrb[0].mxu0
    %v118 = vpop.f32.mrb[0].mxu0
    %v119 = vadd.f32 %v70, %v118
    %v120 = vpop.f32.mrb[0].mxu0
    %121 = vdwg.mxu0
    %v122 = vlaneseq
    %v123 = vshrl.u32 %v122, 7
    %v124 = vsub.s32 1, %v123
    %v125 = vrot.slane %v63, %v124
    %v130 = vunpack.c.l.b16 %v31
    %v131 = vunpack.c.l.b16 %v32
    %v132 = vunpack.c.l.b16 %v33
    %v133 = vunpack.c.l.b16 %v34
    %v134 = vpack.c.b16 %v131, %v130
    %v135 = vpack.c.b16 %v133, %v132
    %vm138 = vcmask 261120
    %v140 = vsel %vm138, 0, 0
    %142 = vmatprep.subr.bf16.mxu0 0
    %143 = vmatpush1.bf16.msra.mxu0 %v134
    %144 = vmatprep.subr.bf16.mxu0 0
    %145 = vmatpush1.bf16.msra.mxu0 %v135
    %146 = vmatprep.subr.bf16.mxu0 0
    %147 = vmatpush1.bf16.msra.mxu0 0
    %148 = vmatprep.subr.bf16.mxu0 0
    %149 = vmatpush1.bf16.msra.mxu0 0
    %150 = vmatprep.subr.bf16.mxu0 0
    %151 = vmatpush1.bf16.msra.mxu0 0
    %152 = vmatprep.subr.bf16.mxu0 0
    %153 = vmatpush1.bf16.msra.mxu0 0
    %154 = vmatprep.subr.bf16.mxu0 0
    %155 = vmatpush1.bf16.msra.mxu0 0
    %156 = vmatprep.subr.bf16.mxu0 0
    %157 = vmatpush1.bf16.msra.mxu0 0
    %158 = vmatprep.subr.bf16.mxu0 0
    %159 = vmatpush1.bf16.msra.mxu0 0
    %160 = vmatprep.subr.bf16.mxu0 0
    %161 = vmatpush1.bf16.msra.mxu0 0
    %162 = vmatprep.subr.bf16.mxu0 0
    %163 = vmatpush1.bf16.msra.mxu0 0
    %164 = vmatprep.subr.bf16.mxu0 0
    %165 = vmatpush1.bf16.msra.mxu0 0
    %166 = vmatprep.subr.bf16.mxu0 0
    %167 = vmatpush1.bf16.msra.mxu0 0
    %168 = vmatprep.subr.bf16.mxu0 0
    %169 = vmatpush1.bf16.msra.mxu0 0
    %170 = vmatprep.subr.bf16.mxu0 0
    %171 = vmatpush1.bf16.msra.mxu0 0
    %172 = vmatprep.subr.bf16.mxu0 0
    %173 = vmatpush1.bf16.msra.mxu0 0
    %174 = vmatprep.mubr.bf16.mxu0 0
    %175 = vmatmul.mubr.bf16.gmra.mrb[0].mxu0 %v140
    %v176 = vpop.f32.mrb[0].mxu0
    %v177 = vadd.f32 0.0, %v176
    %v178 = vpop.f32.mrb[0].mxu0
    %v179 = vpop.f32.mrb[0].mxu0
    %v180 = vpop.f32.mrb[0].mxu0
    %181 = vdwg.mxu0
    %v182 = vadd.f32 %v116, %v177
    %v183 = vxor.u32 %v182, 2147483648
    %v184 = vmul.f32 %v183, 1.442695
    %v185 = vpow.pop %v184
    %v186 = vadd.f32 %v185, 1.0
    %v187 = vrcp.pop %v186
    %v188 = vmul.f32 1.0, %v187
    %v189 = vtanh.pop %v182
    %v190 = vmul.f32 %v188, 0.0
    %192 = vrot.lane.b32.xlu0 %v189, 64
    %v193 = vpop.permute.xlu0 %192
    %v195 = vmul.f32 %v188, %v193
    %197 = vrot.lane.b32.xlu0 %v195, 32
    %v198 = vpop.permute.xlu0 %197
    %v200 = vadd.f32 %v190, %v198
    %v201 = vtanh.pop %v200
    %203 = vrot.lane.b32.xlu0 %v201, 64
    %v204 = vpop.permute.xlu0 %203
    %v206 = vmul.f32 %v188, %v204
    %v207 = vpack.c.bf16 %v206, %v206
    %209 = vrot.lane.b32.xlu0 %v207, 32
    %v210 = vpop.permute.xlu0 %209
    %v215 = vunpack.c.l.b16 %v35
    %v216 = vunpack.c.l.b16 %v36
    %v217 = vunpack.c.l.b16 %v37
    %v218 = vunpack.c.l.b16 %v38
    %v219 = vpack.c.b16 %v216, %v215
    %v220 = vpack.c.b16 %v218, %v217
    %v224 = vsel %vm138, %v210, 0
    %226 = vmatprep.subr.bf16.mxu0 0
    %227 = vmatpush1.bf16.msra.mxu0 %v219
    %228 = vmatprep.subr.bf16.mxu0 0
    %229 = vmatpush1.bf16.msra.mxu0 %v220
    %230 = vmatprep.subr.bf16.mxu0 0
    %231 = vmatpush1.bf16.msra.mxu0 0
    %232 = vmatprep.subr.bf16.mxu0 0
    %233 = vmatpush1.bf16.msra.mxu0 0
    %234 = vmatprep.subr.bf16.mxu0 0
    %235 = vmatpush1.bf16.msra.mxu0 0
    %236 = vmatprep.subr.bf16.mxu0 0
    %237 = vmatpush1.bf16.msra.mxu0 0
    %238 = vmatprep.subr.bf16.mxu0 0
    %239 = vmatpush1.bf16.msra.mxu0 0
    %240 = vmatprep.subr.bf16.mxu0 0
    %241 = vmatpush1.bf16.msra.mxu0 0
    %242 = vmatprep.subr.bf16.mxu0 0
    %243 = vmatpush1.bf16.msra.mxu0 0
    %244 = vmatprep.subr.bf16.mxu0 0
    %245 = vmatpush1.bf16.msra.mxu0 0
    %246 = vmatprep.subr.bf16.mxu0 0
    %247 = vmatpush1.bf16.msra.mxu0 0
    %248 = vmatprep.subr.bf16.mxu0 0
    %249 = vmatpush1.bf16.msra.mxu0 0
    %250 = vmatprep.subr.bf16.mxu0 0
    %251 = vmatpush1.bf16.msra.mxu0 0
    %252 = vmatprep.subr.bf16.mxu0 0
    %253 = vmatpush1.bf16.msra.mxu0 0
    %254 = vmatprep.subr.bf16.mxu0 0
    %255 = vmatpush1.bf16.msra.mxu0 0
    %256 = vmatprep.subr.bf16.mxu0 0
    %257 = vmatpush1.bf16.msra.mxu0 0
    %258 = vmatprep.mubr.bf16.mxu0 0
    %259 = vmatmul.mubr.bf16.gmra.mrb[0].mxu0 %v224
    %v260 = vpop.f32.mrb[0].mxu0
    %v261 = vadd.f32 %v125, %v260
    %v262 = vpop.f32.mrb[0].mxu0
    %v263 = vpop.f32.mrb[0].mxu0
    %v264 = vpop.f32.mrb[0].mxu0
    %265 = vdwg.mxu0
    %v266 = vxor.u32 %v261, 2147483648
    %v267 = vmul.f32 %v266, 1.442695
    %v268 = vpow.pop %v267
    %v269 = vadd.f32 %v268, 1.0
    %v270 = vrcp.pop %v269
    %v271 = vmul.f32 1.0, %v270
    %v272 = vtanh.pop %v261
    %v273 = vmul.f32 %v271, 0.0
    %275 = vrot.lane.b32.xlu0 %v272, 64
    %v276 = vpop.permute.xlu0 %275
    %v278 = vmul.f32 %v271, %v276
    %280 = vrot.lane.b32.xlu0 %v278, 32
    %v281 = vpop.permute.xlu0 %280
    %v283 = vadd.f32 %v273, %v281
    %v284 = vtanh.pop %v283
    %286 = vrot.lane.b32.xlu0 %v284, 64
    %v287 = vpop.permute.xlu0 %286
    %v289 = vmul.f32 %v271, %v287
    %v290 = vpack.c.bf16 %v289, %v289
    %292 = vrot.lane.b32.xlu0 %v290, 32
    %v293 = vpop.permute.xlu0 %292
    %v298 = vunpack.c.l.b16 %v39
    %v299 = vunpack.c.l.b16 %v40
    %v300 = vunpack.c.l.b16 %v41
    %v301 = vunpack.c.l.b16 %v42
    %v302 = vpack.c.b16 %v299, %v298
    %v303 = vpack.c.b16 %v301, %v300
    %v307 = vsel %vm138, %v293, 0
    %309 = vmatprep.subr.bf16.mxu0 0
    %310 = vmatpush1.bf16.msra.mxu0 %v302
    %311 = vmatprep.subr.bf16.mxu0 0
    %312 = vmatpush1.bf16.msra.mxu0 %v303
    %313 = vmatprep.subr.bf16.mxu0 0
    %314 = vmatpush1.bf16.msra.mxu0 0
    %315 = vmatprep.subr.bf16.mxu0 0
    %316 = vmatpush1.bf16.msra.mxu0 0
    %317 = vmatprep.subr.bf16.mxu0 0
    %318 = vmatpush1.bf16.msra.mxu0 0
    %319 = vmatprep.subr.bf16.mxu0 0
    %320 = vmatpush1.bf16.msra.mxu0 0
    %321 = vmatprep.subr.bf16.mxu0 0
    %322 = vmatpush1.bf16.msra.mxu0 0
    %323 = vmatprep.subr.bf16.mxu0 0
    %324 = vmatpush1.bf16.msra.mxu0 0
    %325 = vmatprep.subr.bf16.mxu0 0
    %326 = vmatpush1.bf16.msra.mxu0 0
    %327 = vmatprep.subr.bf16.mxu0 0
    %328 = vmatpush1.bf16.msra.mxu0 0
    %329 = vmatprep.subr.bf16.mxu0 0
    %330 = vmatpush1.bf16.msra.mxu0 0
    %331 = vmatprep.subr.bf16.mxu0 0
    %332 = vmatpush1.bf16.msra.mxu0 0
    %333 = vmatprep.subr.bf16.mxu0 0
    %334 = vmatpush1.bf16.msra.mxu0 0
    %335 = vmatprep.subr.bf16.mxu0 0
    %336 = vmatpush1.bf16.msra.mxu0 0
    %337 = vmatprep.subr.bf16.mxu0 0
    %338 = vmatpush1.bf16.msra.mxu0 0
    %339 = vmatprep.subr.bf16.mxu0 0
    %340 = vmatpush1.bf16.msra.mxu0 0
    %341 = vmatprep.mubr.bf16.mxu0 0
    %342 = vmatmul.mubr.bf16.gmra.mrb[0].mxu0 %v307
    %v343 = vpop.f32.mrb[0].mxu0
    %v344 = vadd.f32 %v125, %v343
    %v345 = vpop.f32.mrb[0].mxu0
    %v346 = vpop.f32.mrb[0].mxu0
    %v347 = vpop.f32.mrb[0].mxu0
    %348 = vdwg.mxu0
    %349 = vmatprep.subr.bf16.mxu0 0
    %350 = vmatpush1.bf16.msra.mxu0 %v134
    %351 = vmatprep.subr.bf16.mxu0 0
    %352 = vmatpush1.bf16.msra.mxu0 %v135
    %353 = vmatprep.subr.bf16.mxu0 0
    %354 = vmatpush1.bf16.msra.mxu0 0
    %355 = vmatprep.subr.bf16.mxu0 0
    %356 = vmatpush1.bf16.msra.mxu0 0
    %357 = vmatprep.subr.bf16.mxu0 0
    %358 = vmatpush1.bf16.msra.mxu0 0
    %359 = vmatprep.subr.bf16.mxu0 0
    %360 = vmatpush1.bf16.msra.mxu0 0
    %361 = vmatprep.subr.bf16.mxu0 0
    %362 = vmatpush1.bf16.msra.mxu0 0
    %363 = vmatprep.subr.bf16.mxu0 0
    %364 = vmatpush1.bf16.msra.mxu0 0
    %365 = vmatprep.subr.bf16.mxu0 0
    %366 = vmatpush1.bf16.msra.mxu0 0
    %367 = vmatprep.subr.bf16.mxu0 0
    %368 = vmatpush1.bf16.msra.mxu0 0
    %369 = vmatprep.subr.bf16.mxu0 0
    %370 = vmatpush1.bf16.msra.mxu0 0
    %371 = vmatprep.subr.bf16.mxu0 0
    %372 = vmatpush1.bf16.msra.mxu0 0
    %373 = vmatprep.subr.bf16.mxu0 0
    %374 = vmatpush1.bf16.msra.mxu0 0
    %375 = vmatprep.subr.bf16.mxu0 0
    %376 = vmatpush1.bf16.msra.mxu0 0
    %377 = vmatprep.subr.bf16.mxu0 0
    %378 = vmatpush1.bf16.msra.mxu0 0
    %379 = vmatprep.subr.bf16.mxu0 0
    %380 = vmatpush1.bf16.msra.mxu0 0
    %381 = vmatprep.mubr.bf16.mxu0 0
    %382 = vmatmul.mubr.bf16.gmra.mrb[0].mxu0 %v224
    %v383 = vpop.f32.mrb[0].mxu0
    %v384 = vadd.f32 0.0, %v383
    %v385 = vpop.f32.mrb[0].mxu0
    %v386 = vpop.f32.mrb[0].mxu0
    %v387 = vpop.f32.mrb[0].mxu0
    %388 = vdwg.mxu0
    %v390 = vrot.slane %v384, 6
    %v392 = vadd.f32 %v116, %v390
    %v393 = vxor.u32 %v392, 2147483648
    %v394 = vmul.f32 %v393, 1.442695
    %v395 = vpow.pop %v394
    %v396 = vadd.f32 %v395, 1.0
    %v397 = vrcp.pop %v396
    %v398 = vmul.f32 1.0, %v397
    %v399 = vtanh.pop %v392
    %v401 = vrot.slane %v200, 6
    %v403 = vmul.f32 %v398, %v401
    %405 = vrot.lane.b32.xlu0 %v399, 64
    %v406 = vpop.permute.xlu0 %405
    %v408 = vmul.f32 %v398, %v406
    %410 = vrot.lane.b32.xlu0 %v408, 32
    %v411 = vpop.permute.xlu0 %410
    %v413 = vadd.f32 %v403, %v411
    %v414 = vtanh.pop %v413
    %416 = vrot.lane.b32.xlu0 %v414, 64
    %v417 = vpop.permute.xlu0 %416
    %v419 = vmul.f32 %v398, %v417
    %v420 = vpack.c.bf16 %v419, %v419
    %v422 = vrot.slane %v420, 1
    %423 = vrot.lane.b32.xlu0 %v422, 32
    %v424 = vpop.permute.xlu0 %423
    %v426 = vsel %vm138, %v424, 0
    %428 = vmatprep.subr.bf16.mxu0 0
    %429 = vmatpush1.bf16.msra.mxu0 %v219
    %430 = vmatprep.subr.bf16.mxu0 0
    %431 = vmatpush1.bf16.msra.mxu0 %v220
    %432 = vmatprep.subr.bf16.mxu0 0
    %433 = vmatpush1.bf16.msra.mxu0 0
    %434 = vmatprep.subr.bf16.mxu0 0
    %435 = vmatpush1.bf16.msra.mxu0 0
    %436 = vmatprep.subr.bf16.mxu0 0
    %437 = vmatpush1.bf16.msra.mxu0 0
    %438 = vmatprep.subr.bf16.mxu0 0
    %439 = vmatpush1.bf16.msra.mxu0 0
    %440 = vmatprep.subr.bf16.mxu0 0
    %441 = vmatpush1.bf16.msra.mxu0 0
    %442 = vmatprep.subr.bf16.mxu0 0
    %443 = vmatpush1.bf16.msra.mxu0 0
    %444 = vmatprep.subr.bf16.mxu0 0
    %445 = vmatpush1.bf16.msra.mxu0 0
    %446 = vmatprep.subr.bf16.mxu0 0
    %447 = vmatpush1.bf16.msra.mxu0 0
    %448 = vmatprep.subr.bf16.mxu0 0
    %449 = vmatpush1.bf16.msra.mxu0 0
    %450 = vmatprep.subr.bf16.mxu0 0
    %451 = vmatpush1.bf16.msra.mxu0 0
    %452 = vmatprep.subr.bf16.mxu0 0
    %453 = vmatpush1.bf16.msra.mxu0 0
    %454 = vmatprep.subr.bf16.mxu0 0
    %455 = vmatpush1.bf16.msra.mxu0 0
    %456 = vmatprep.subr.bf16.mxu0 0
    %457 = vmatpush1.bf16.msra.mxu0 0
    %458 = vmatprep.subr.bf16.mxu0 0
    %459 = vmatpush1.bf16.msra.mxu0 0
    %460 = vmatprep.mubr.bf16.mxu0 0
    %461 = vmatmul.mubr.bf16.gmra.mrb[0].mxu0 %v426
    %v462 = vpop.f32.mrb[0].mxu0
    %v463 = vadd.f32 %v344, %v462
    %v464 = vpop.f32.mrb[0].mxu0
    %v465 = vpop.f32.mrb[0].mxu0
    %v466 = vpop.f32.mrb[0].mxu0
    %467 = vdwg.mxu0
    %v468 = vxor.u32 %v463, 2147483648
    %v469 = vmul.f32 %v468, 1.442695
    %v470 = vpow.pop %v469
    %v471 = vadd.f32 %v470, 1.0
    %v472 = vrcp.pop %v471
    %v473 = vmul.f32 1.0, %v472
    %v474 = vtanh.pop %v463
    %v475 = vmul.f32 %v473, %v283
    %477 = vrot.lane.b32.xlu0 %v474, 64
    %v478 = vpop.permute.xlu0 %477
    %v480 = vmul.f32 %v473, %v478
    %482 = vrot.lane.b32.xlu0 %v480, 32
    %v483 = vpop.permute.xlu0 %482
    %v485 = vadd.f32 %v475, %v483
    %v486 = vtanh.pop %v485
    %488 = vrot.lane.b32.xlu0 %v486, 64
    %v489 = vpop.permute.xlu0 %488
    %v491 = vmul.f32 %v473, %v489
    %v492 = vpack.c.bf16 %v491, %v491
    %494 = vrot.lane.b32.xlu0 %v492, 32
    %v495 = vpop.permute.xlu0 %494
    %v497 = vsel %vm138, %v495, 0
    %499 = vmatprep.subr.bf16.mxu0 0
    %500 = vmatpush1.bf16.msra.mxu0 %v302
    %501 = vmatprep.subr.bf16.mxu0 0
    %502 = vmatpush1.bf16.msra.mxu0 %v303
    %503 = vmatprep.subr.bf16.mxu0 0
    %504 = vmatpush1.bf16.msra.mxu0 0
    %505 = vmatprep.subr.bf16.mxu0 0
    %506 = vmatpush1.bf16.msra.mxu0 0
    %507 = vmatprep.subr.bf16.mxu0 0
    %508 = vmatpush1.bf16.msra.mxu0 0
    %509 = vmatprep.subr.bf16.mxu0 0
    %510 = vmatpush1.bf16.msra.mxu0 0
    %511 = vmatprep.subr.bf16.mxu0 0
    %512 = vmatpush1.bf16.msra.mxu0 0
    %513 = vmatprep.subr.bf16.mxu0 0
    %514 = vmatpush1.bf16.msra.mxu0 0
    %515 = vmatprep.subr.bf16.mxu0 0
    %516 = vmatpush1.bf16.msra.mxu0 0
    %517 = vmatprep.subr.bf16.mxu0 0
    %518 = vmatpush1.bf16.msra.mxu0 0
    %519 = vmatprep.subr.bf16.mxu0 0
    %520 = vmatpush1.bf16.msra.mxu0 0
    %521 = vmatprep.subr.bf16.mxu0 0
    %522 = vmatpush1.bf16.msra.mxu0 0
    %523 = vmatprep.subr.bf16.mxu0 0
    %524 = vmatpush1.bf16.msra.mxu0 0
    %525 = vmatprep.subr.bf16.mxu0 0
    %526 = vmatpush1.bf16.msra.mxu0 0
    %527 = vmatprep.subr.bf16.mxu0 0
    %528 = vmatpush1.bf16.msra.mxu0 0
    %529 = vmatprep.subr.bf16.mxu0 0
    %530 = vmatpush1.bf16.msra.mxu0 0
    %531 = vmatprep.mubr.bf16.mxu0 0
    %532 = vmatmul.mubr.bf16.gmra.mrb[0].mxu0 %v497
    %v533 = vpop.f32.mrb[0].mxu0
    %v534 = vadd.f32 %v125, %v533
    %v535 = vpop.f32.mrb[0].mxu0
    %v536 = vpop.f32.mrb[0].mxu0
    %v537 = vpop.f32.mrb[0].mxu0
    %538 = vdwg.mxu0
    %539 = vmatprep.subr.bf16.mxu0 0
    %540 = vmatpush1.bf16.msra.mxu0 %v134
    %541 = vmatprep.subr.bf16.mxu0 0
    %542 = vmatpush1.bf16.msra.mxu0 %v135
    %543 = vmatprep.subr.bf16.mxu0 0
    %544 = vmatpush1.bf16.msra.mxu0 0
    %545 = vmatprep.subr.bf16.mxu0 0
    %546 = vmatpush1.bf16.msra.mxu0 0
    %547 = vmatprep.subr.bf16.mxu0 0
    %548 = vmatpush1.bf16.msra.mxu0 0
    %549 = vmatprep.subr.bf16.mxu0 0
    %550 = vmatpush1.bf16.msra.mxu0 0
    %551 = vmatprep.subr.bf16.mxu0 0
    %552 = vmatpush1.bf16.msra.mxu0 0
    %553 = vmatprep.subr.bf16.mxu0 0
    %554 = vmatpush1.bf16.msra.mxu0 0
    %555 = vmatprep.subr.bf16.mxu0 0
    %556 = vmatpush1.bf16.msra.mxu0 0
    %557 = vmatprep.subr.bf16.mxu0 0
    %558 = vmatpush1.bf16.msra.mxu0 0
    %559 = vmatprep.subr.bf16.mxu0 0
    %560 = vmatpush1.bf16.msra.mxu0 0
    %561 = vmatprep.subr.bf16.mxu0 0
    %562 = vmatpush1.bf16.msra.mxu0 0
    %563 = vmatprep.subr.bf16.mxu0 0
    %564 = vmatpush1.bf16.msra.mxu0 0
    %565 = vmatprep.subr.bf16.mxu0 0
    %566 = vmatpush1.bf16.msra.mxu0 0
    %567 = vmatprep.subr.bf16.mxu0 0
    %568 = vmatpush1.bf16.msra.mxu0 0
    %569 = vmatprep.subr.bf16.mxu0 0
    %570 = vmatpush1.bf16.msra.mxu0 0
    %571 = vmatprep.mubr.bf16.mxu0 0
    %572 = vmatmul.mubr.bf16.gmra.mrb[0].mxu0 %v426
    %v573 = vpop.f32.mrb[0].mxu0
    %v574 = vadd.f32 0.0, %v573
    %v575 = vpop.f32.mrb[0].mxu0
    %v576 = vpop.f32.mrb[0].mxu0
    %v577 = vpop.f32.mrb[0].mxu0
    %578 = vdwg.mxu0
    %v580 = vrot.slane %v574, 4
    %v582 = vadd.f32 %v116, %v580
    %v583 = vxor.u32 %v582, 2147483648
    %v584 = vmul.f32 %v583, 1.442695
    %v585 = vpow.pop %v584
    %v586 = vadd.f32 %v585, 1.0
    %v587 = vrcp.pop %v586
    %v588 = vmul.f32 1.0, %v587
    %v589 = vtanh.pop %v582
    %v591 = vrot.slane %v413, 6
    %v593 = vmul.f32 %v588, %v591
    %595 = vrot.lane.b32.xlu0 %v589, 64
    %v596 = vpop.permute.xlu0 %595
    %v598 = vmul.f32 %v588, %v596
    %600 = vrot.lane.b32.xlu0 %v598, 32
    %v601 = vpop.permute.xlu0 %600
    %v603 = vadd.f32 %v593, %v601
    %v604 = vtanh.pop %v603
    %606 = vrot.lane.b32.xlu0 %v604, 64
    %v607 = vpop.permute.xlu0 %606
    %v609 = vmul.f32 %v588, %v607
    %v610 = vpack.c.bf16 %v609, %v609
    %v612 = vrot.slane %v610, 2
    %613 = vrot.lane.b32.xlu0 %v612, 32
    %v614 = vpop.permute.xlu0 %613
    %v616 = vsel %vm138, %v614, 0
    %618 = vmatprep.subr.bf16.mxu0 0
    %619 = vmatpush1.bf16.msra.mxu0 %v219
    %620 = vmatprep.subr.bf16.mxu0 0
    %621 = vmatpush1.bf16.msra.mxu0 %v220
    %622 = vmatprep.subr.bf16.mxu0 0
    %623 = vmatpush1.bf16.msra.mxu0 0
    %624 = vmatprep.subr.bf16.mxu0 0
    %625 = vmatpush1.bf16.msra.mxu0 0
    %626 = vmatprep.subr.bf16.mxu0 0
    %627 = vmatpush1.bf16.msra.mxu0 0
    %628 = vmatprep.subr.bf16.mxu0 0
    %629 = vmatpush1.bf16.msra.mxu0 0
    %630 = vmatprep.subr.bf16.mxu0 0
    %631 = vmatpush1.bf16.msra.mxu0 0
    %632 = vmatprep.subr.bf16.mxu0 0
    %633 = vmatpush1.bf16.msra.mxu0 0
    %634 = vmatprep.subr.bf16.mxu0 0
    %635 = vmatpush1.bf16.msra.mxu0 0
    %636 = vmatprep.subr.bf16.mxu0 0
    %637 = vmatpush1.bf16.msra.mxu0 0
    %638 = vmatprep.subr.bf16.mxu0 0
    %639 = vmatpush1.bf16.msra.mxu0 0
    %640 = vmatprep.subr.bf16.mxu0 0
    %641 = vmatpush1.bf16.msra.mxu0 0
    %642 = vmatprep.subr.bf16.mxu0 0
    %643 = vmatpush1.bf16.msra.mxu0 0
    %644 = vmatprep.subr.bf16.mxu0 0
    %645 = vmatpush1.bf16.msra.mxu0 0
    %646 = vmatprep.subr.bf16.mxu0 0
    %647 = vmatpush1.bf16.msra.mxu0 0
    %648 = vmatprep.subr.bf16.mxu0 0
    %649 = vmatpush1.bf16.msra.mxu0 0
    %650 = vmatprep.mubr.bf16.mxu0 0
    %651 = vmatmul.mubr.bf16.gmra.mrb[0].mxu0 %v616
    %v652 = vpop.f32.mrb[0].mxu0
    %v653 = vadd.f32 %v534, %v652
    %v654 = vpop.f32.mrb[0].mxu0
    %v655 = vpop.f32.mrb[0].mxu0
    %v656 = vpop.f32.mrb[0].mxu0
    %657 = vdwg.mxu0
    %v658 = vxor.u32 %v653, 2147483648
    %v659 = vmul.f32 %v658, 1.442695
    %v660 = vpow.pop %v659
    %v661 = vadd.f32 %v660, 1.0
    %v662 = vrcp.pop %v661
    %v663 = vmul.f32 1.0, %v662
    %v664 = vtanh.pop %v653
    %v665 = vmul.f32 %v663, %v485
    %667 = vrot.lane.b32.xlu0 %v664, 64
    %v668 = vpop.permute.xlu0 %667
    %v670 = vmul.f32 %v663, %v668
    %672 = vrot.lane.b32.xlu0 %v670, 32
    %v673 = vpop.permute.xlu0 %672
    %v675 = vadd.f32 %v665, %v673
    %v676 = vtanh.pop %v675
    %678 = vrot.lane.b32.xlu0 %v676, 64
    %v679 = vpop.permute.xlu0 %678
    %v681 = vmul.f32 %v663, %v679
    %v682 = vpack.c.bf16 %v681, %v681
    %684 = vrot.lane.b32.xlu0 %v682, 32
    %v685 = vpop.permute.xlu0 %684
    %v687 = vsel %vm138, %v685, 0
    %689 = vmatprep.subr.bf16.mxu0 0
    %690 = vmatpush1.bf16.msra.mxu0 %v302
    %691 = vmatprep.subr.bf16.mxu0 0
    %692 = vmatpush1.bf16.msra.mxu0 %v303
    %693 = vmatprep.subr.bf16.mxu0 0
    %694 = vmatpush1.bf16.msra.mxu0 0
    %695 = vmatprep.subr.bf16.mxu0 0
    %696 = vmatpush1.bf16.msra.mxu0 0
    %697 = vmatprep.subr.bf16.mxu0 0
    %698 = vmatpush1.bf16.msra.mxu0 0
    %699 = vmatprep.subr.bf16.mxu0 0
    %700 = vmatpush1.bf16.msra.mxu0 0
    %701 = vmatprep.subr.bf16.mxu0 0
    %702 = vmatpush1.bf16.msra.mxu0 0
    %703 = vmatprep.subr.bf16.mxu0 0
    %704 = vmatpush1.bf16.msra.mxu0 0
    %705 = vmatprep.subr.bf16.mxu0 0
    %706 = vmatpush1.bf16.msra.mxu0 0
    %707 = vmatprep.subr.bf16.mxu0 0
    %708 = vmatpush1.bf16.msra.mxu0 0
    %709 = vmatprep.subr.bf16.mxu0 0
    %710 = vmatpush1.bf16.msra.mxu0 0
    %711 = vmatprep.subr.bf16.mxu0 0
    %712 = vmatpush1.bf16.msra.mxu0 0
    %713 = vmatprep.subr.bf16.mxu0 0
    %714 = vmatpush1.bf16.msra.mxu0 0
    %715 = vmatprep.subr.bf16.mxu0 0
    %716 = vmatpush1.bf16.msra.mxu0 0
    %717 = vmatprep.subr.bf16.mxu0 0
    %718 = vmatpush1.bf16.msra.mxu0 0
    %719 = vmatprep.subr.bf16.mxu0 0
    %720 = vmatpush1.bf16.msra.mxu0 0
    %721 = vmatprep.mubr.bf16.mxu0 0
    %722 = vmatmul.mubr.bf16.gmra.mrb[0].mxu0 %v687
    %v723 = vpop.f32.mrb[0].mxu0
    %v724 = vadd.f32 %v125, %v723
    %v725 = vpop.f32.mrb[0].mxu0
    %v726 = vpop.f32.mrb[0].mxu0
    %v727 = vpop.f32.mrb[0].mxu0
    %728 = vdwg.mxu0
    %729 = vmatprep.subr.bf16.mxu0 0
    %730 = vmatpush1.bf16.msra.mxu0 %v134
    %731 = vmatprep.subr.bf16.mxu0 0
    %732 = vmatpush1.bf16.msra.mxu0 %v135
    %733 = vmatprep.subr.bf16.mxu0 0
    %734 = vmatpush1.bf16.msra.mxu0 0
    %735 = vmatprep.subr.bf16.mxu0 0
    %736 = vmatpush1.bf16.msra.mxu0 0
    %737 = vmatprep.subr.bf16.mxu0 0
    %738 = vmatpush1.bf16.msra.mxu0 0
    %739 = vmatprep.subr.bf16.mxu0 0
    %740 = vmatpush1.bf16.msra.mxu0 0
    %741 = vmatprep.subr.bf16.mxu0 0
    %742 = vmatpush1.bf16.msra.mxu0 0
    %743 = vmatprep.subr.bf16.mxu0 0
    %744 = vmatpush1.bf16.msra.mxu0 0
    %745 = vmatprep.subr.bf16.mxu0 0
    %746 = vmatpush1.bf16.msra.mxu0 0
    %747 = vmatprep.subr.bf16.mxu0 0
    %748 = vmatpush1.bf16.msra.mxu0 0
    %749 = vmatprep.subr.bf16.mxu0 0
    %750 = vmatpush1.bf16.msra.mxu0 0
    %751 = vmatprep.subr.bf16.mxu0 0
    %752 = vmatpush1.bf16.msra.mxu0 0
    %753 = vmatprep.subr.bf16.mxu0 0
    %754 = vmatpush1.bf16.msra.mxu0 0
    %755 = vmatprep.subr.bf16.mxu0 0
    %756 = vmatpush1.bf16.msra.mxu0 0
    %757 = vmatprep.subr.bf16.mxu0 0
    %758 = vmatpush1.bf16.msra.mxu0 0
    %759 = vmatprep.subr.bf16.mxu0 0
    %760 = vmatpush1.bf16.msra.mxu0 0
    %761 = vmatprep.mubr.bf16.mxu0 0
    %762 = vmatmul.mubr.bf16.gmra.mrb[0].mxu0 %v616
    %v763 = vpop.f32.mrb[0].mxu0
    %v764 = vadd.f32 0.0, %v763
    %v765 = vpop.f32.mrb[0].mxu0
    %v766 = vpop.f32.mrb[0].mxu0
    %v767 = vpop.f32.mrb[0].mxu0
    %768 = vdwg.mxu0
    %v770 = vrot.slane %v764, 2
    %v772 = vadd.f32 %v116, %v770
    %v773 = vxor.u32 %v772, 2147483648
    %v774 = vmul.f32 %v773, 1.442695
    %v775 = vpow.pop %v774
    %v776 = vadd.f32 %v775, 1.0
    %v777 = vrcp.pop %v776
    %v778 = vmul.f32 1.0, %v777
    %v779 = vtanh.pop %v772
    %v781 = vrot.slane %v603, 6
    %v783 = vmul.f32 %v778, %v781
    %785 = vrot.lane.b32.xlu0 %v779, 64
    %v786 = vpop.permute.xlu0 %785
    %v788 = vmul.f32 %v778, %v786
    %790 = vrot.lane.b32.xlu0 %v788, 32
    %v791 = vpop.permute.xlu0 %790
    %v793 = vadd.f32 %v783, %v791
    %v794 = vtanh.pop %v793
    %796 = vrot.lane.b32.xlu0 %v794, 64
    %v797 = vpop.permute.xlu0 %796
    %v799 = vmul.f32 %v778, %v797
    %v800 = vpack.c.bf16 %v799, %v799
    %v802 = vrot.slane %v800, 3
    %803 = vrot.lane.b32.xlu0 %v802, 32
    %v804 = vpop.permute.xlu0 %803
    %v806 = vsel %vm138, %v804, 0
    %808 = vmatprep.subr.bf16.mxu0 0
    %809 = vmatpush1.bf16.msra.mxu0 %v219
    %810 = vmatprep.subr.bf16.mxu0 0
    %811 = vmatpush1.bf16.msra.mxu0 %v220
    %812 = vmatprep.subr.bf16.mxu0 0
    %813 = vmatpush1.bf16.msra.mxu0 0
    %814 = vmatprep.subr.bf16.mxu0 0
    %815 = vmatpush1.bf16.msra.mxu0 0
    %816 = vmatprep.subr.bf16.mxu0 0
    %817 = vmatpush1.bf16.msra.mxu0 0
    %818 = vmatprep.subr.bf16.mxu0 0
    %819 = vmatpush1.bf16.msra.mxu0 0
    %820 = vmatprep.subr.bf16.mxu0 0
    %821 = vmatpush1.bf16.msra.mxu0 0
    %822 = vmatprep.subr.bf16.mxu0 0
    %823 = vmatpush1.bf16.msra.mxu0 0
    %824 = vmatprep.subr.bf16.mxu0 0
    %825 = vmatpush1.bf16.msra.mxu0 0
    %826 = vmatprep.subr.bf16.mxu0 0
    %827 = vmatpush1.bf16.msra.mxu0 0
    %828 = vmatprep.subr.bf16.mxu0 0
    %829 = vmatpush1.bf16.msra.mxu0 0
    %830 = vmatprep.subr.bf16.mxu0 0
    %831 = vmatpush1.bf16.msra.mxu0 0
    %832 = vmatprep.subr.bf16.mxu0 0
    %833 = vmatpush1.bf16.msra.mxu0 0
    %834 = vmatprep.subr.bf16.mxu0 0
    %835 = vmatpush1.bf16.msra.mxu0 0
    %836 = vmatprep.subr.bf16.mxu0 0
    %837 = vmatpush1.bf16.msra.mxu0 0
    %838 = vmatprep.subr.bf16.mxu0 0
    %839 = vmatpush1.bf16.msra.mxu0 0
    %840 = vmatprep.mubr.bf16.mxu0 0
    %841 = vmatmul.mubr.bf16.gmra.mrb[0].mxu0 %v806
    %v842 = vpop.f32.mrb[0].mxu0
    %v843 = vadd.f32 %v724, %v842
    %v844 = vpop.f32.mrb[0].mxu0
    %v845 = vpop.f32.mrb[0].mxu0
    %v846 = vpop.f32.mrb[0].mxu0
    %847 = vdwg.mxu0
    %v848 = vxor.u32 %v843, 2147483648
    %v849 = vmul.f32 %v848, 1.442695
    %v850 = vpow.pop %v849
    %v851 = vadd.f32 %v850, 1.0
    %v852 = vrcp.pop %v851
    %v853 = vmul.f32 1.0, %v852
    %v854 = vtanh.pop %v843
    %v855 = vmul.f32 %v853, %v675
    %857 = vrot.lane.b32.xlu0 %v854, 64
    %v858 = vpop.permute.xlu0 %857
    %v860 = vmul.f32 %v853, %v858
    %862 = vrot.lane.b32.xlu0 %v860, 32
    %v863 = vpop.permute.xlu0 %862
    %v865 = vadd.f32 %v855, %v863
    %v866 = vtanh.pop %v865
    %868 = vrot.lane.b32.xlu0 %v866, 64
    %v869 = vpop.permute.xlu0 %868
    %v871 = vmul.f32 %v853, %v869
    %v872 = vpack.c.bf16 %v871, %v871
    %874 = vrot.lane.b32.xlu0 %v872, 32
    %v875 = vpop.permute.xlu0 %874
    %v877 = vsel %vm138, %v875, 0
    %879 = vmatprep.subr.bf16.mxu0 0
    %880 = vmatpush1.bf16.msra.mxu0 %v302
    %881 = vmatprep.subr.bf16.mxu0 0
    %882 = vmatpush1.bf16.msra.mxu0 %v303
    %883 = vmatprep.subr.bf16.mxu0 0
    %884 = vmatpush1.bf16.msra.mxu0 0
    %885 = vmatprep.subr.bf16.mxu0 0
    %886 = vmatpush1.bf16.msra.mxu0 0
    %887 = vmatprep.subr.bf16.mxu0 0
    %888 = vmatpush1.bf16.msra.mxu0 0
    %889 = vmatprep.subr.bf16.mxu0 0
    %890 = vmatpush1.bf16.msra.mxu0 0
    %891 = vmatprep.subr.bf16.mxu0 0
    %892 = vmatpush1.bf16.msra.mxu0 0
    %893 = vmatprep.subr.bf16.mxu0 0
    %894 = vmatpush1.bf16.msra.mxu0 0
    %895 = vmatprep.subr.bf16.mxu0 0
    %896 = vmatpush1.bf16.msra.mxu0 0
    %897 = vmatprep.subr.bf16.mxu0 0
    %898 = vmatpush1.bf16.msra.mxu0 0
    %899 = vmatprep.subr.bf16.mxu0 0
    %900 = vmatpush1.bf16.msra.mxu0 0
    %901 = vmatprep.subr.bf16.mxu0 0
    %902 = vmatpush1.bf16.msra.mxu0 0
    %903 = vmatprep.subr.bf16.mxu0 0
    %904 = vmatpush1.bf16.msra.mxu0 0
    %905 = vmatprep.subr.bf16.mxu0 0
    %906 = vmatpush1.bf16.msra.mxu0 0
    %907 = vmatprep.subr.bf16.mxu0 0
    %908 = vmatpush1.bf16.msra.mxu0 0
    %909 = vmatprep.subr.bf16.mxu0 0
    %910 = vmatpush1.bf16.msra.mxu0 0
    %911 = vmatprep.mubr.bf16.mxu0 0
    %912 = vmatmul.mubr.bf16.gmra.mrb[0].mxu0 %v877
    %v913 = vpop.f32.mrb[0].mxu0
    %v914 = vadd.f32 %v125, %v913
    %v915 = vpop.f32.mrb[0].mxu0
    %v916 = vpop.f32.mrb[0].mxu0
    %v917 = vpop.f32.mrb[0].mxu0
    %918 = vdwg.mxu0
    %919 = vmatprep.subr.bf16.mxu0 0
    %920 = vmatpush1.bf16.msra.mxu0 %v134
    %921 = vmatprep.subr.bf16.mxu0 0
    %922 = vmatpush1.bf16.msra.mxu0 %v135
    %923 = vmatprep.subr.bf16.mxu0 0
    %924 = vmatpush1.bf16.msra.mxu0 0
    %925 = vmatprep.subr.bf16.mxu0 0
    %926 = vmatpush1.bf16.msra.mxu0 0
    %927 = vmatprep.subr.bf16.mxu0 0
    %928 = vmatpush1.bf16.msra.mxu0 0
    %929 = vmatprep.subr.bf16.mxu0 0
    %930 = vmatpush1.bf16.msra.mxu0 0
    %931 = vmatprep.subr.bf16.mxu0 0
    %932 = vmatpush1.bf16.msra.mxu0 0
    %933 = vmatprep.subr.bf16.mxu0 0
    %934 = vmatpush1.bf16.msra.mxu0 0
    %935 = vmatprep.subr.bf16.mxu0 0
    %936 = vmatpush1.bf16.msra.mxu0 0
    %937 = vmatprep.subr.bf16.mxu0 0
    %938 = vmatpush1.bf16.msra.mxu0 0
    %939 = vmatprep.subr.bf16.mxu0 0
    %940 = vmatpush1.bf16.msra.mxu0 0
    %941 = vmatprep.subr.bf16.mxu0 0
    %942 = vmatpush1.bf16.msra.mxu0 0
    %943 = vmatprep.subr.bf16.mxu0 0
    %944 = vmatpush1.bf16.msra.mxu0 0
    %945 = vmatprep.subr.bf16.mxu0 0
    %946 = vmatpush1.bf16.msra.mxu0 0
    %947 = vmatprep.subr.bf16.mxu0 0
    %948 = vmatpush1.bf16.msra.mxu0 0
    %949 = vmatprep.subr.bf16.mxu0 0
    %950 = vmatpush1.bf16.msra.mxu0 0
    %951 = vmatprep.mubr.bf16.mxu0 0
    %952 = vmatmul.mubr.bf16.gmra.mrb[0].mxu0 %v806
    %v953 = vpop.f32.mrb[0].mxu0
    %v954 = vadd.f32 0.0, %v953
    %v955 = vpop.f32.mrb[0].mxu0
    %v956 = vpop.f32.mrb[0].mxu0
    %v957 = vpop.f32.mrb[0].mxu0
    %958 = vdwg.mxu0
    %v959 = vadd.f32 %v119, %v954
    %v960 = vxor.u32 %v959, 2147483648
    %v961 = vmul.f32 %v960, 1.442695
    %v962 = vpow.pop %v961
    %v963 = vadd.f32 %v962, 1.0
    %v964 = vrcp.pop %v963
    %v965 = vmul.f32 1.0, %v964
    %v966 = vtanh.pop %v959
    %v968 = vrot.slane %v793, 6
    %v970 = vmul.f32 %v965, %v968
    %972 = vrot.lane.b32.xlu0 %v966, 64
    %v973 = vpop.permute.xlu0 %972
    %v975 = vmul.f32 %v965, %v973
    %977 = vrot.lane.b32.xlu0 %v975, 32
    %v978 = vpop.permute.xlu0 %977
    %v980 = vadd.f32 %v970, %v978
    %v981 = vtanh.pop %v980
    %983 = vrot.lane.b32.xlu0 %v981, 64
    %v984 = vpop.permute.xlu0 %983
    %v986 = vmul.f32 %v965, %v984
    %v987 = vpack.c.bf16 %v986, %v986
    %989 = vrot.lane.b32.xlu0 %v987, 32
    %v990 = vpop.permute.xlu0 %989
    %v992 = vsel %vm138, %v990, 0
    %994 = vmatprep.subr.bf16.mxu0 0
    %995 = vmatpush1.bf16.msra.mxu0 %v219
    %996 = vmatprep.subr.bf16.mxu0 0
    %997 = vmatpush1.bf16.msra.mxu0 %v220
    %998 = vmatprep.subr.bf16.mxu0 0
    %999 = vmatpush1.bf16.msra.mxu0 0
    %1000 = vmatprep.subr.bf16.mxu0 0
    %1001 = vmatpush1.bf16.msra.mxu0 0
    %1002 = vmatprep.subr.bf16.mxu0 0
    %1003 = vmatpush1.bf16.msra.mxu0 0
    %1004 = vmatprep.subr.bf16.mxu0 0
    %1005 = vmatpush1.bf16.msra.mxu0 0
    %1006 = vmatprep.subr.bf16.mxu0 0
    %1007 = vmatpush1.bf16.msra.mxu0 0
    %1008 = vmatprep.subr.bf16.mxu0 0
    %1009 = vmatpush1.bf16.msra.mxu0 0
    %1010 = vmatprep.subr.bf16.mxu0 0
    %1011 = vmatpush1.bf16.msra.mxu0 0
    %1012 = vmatprep.subr.bf16.mxu0 0
    %1013 = vmatpush1.bf16.msra.mxu0 0
    %1014 = vmatprep.subr.bf16.mxu0 0
    %1015 = vmatpush1.bf16.msra.mxu0 0
    %1016 = vmatprep.subr.bf16.mxu0 0
    %1017 = vmatpush1.bf16.msra.mxu0 0
    %1018 = vmatprep.subr.bf16.mxu0 0
    %1019 = vmatpush1.bf16.msra.mxu0 0
    %1020 = vmatprep.subr.bf16.mxu0 0
    %1021 = vmatpush1.bf16.msra.mxu0 0
    %1022 = vmatprep.subr.bf16.mxu0 0
    %1023 = vmatpush1.bf16.msra.mxu0 0
    %1024 = vmatprep.subr.bf16.mxu0 0
    %1025 = vmatpush1.bf16.msra.mxu0 0
    %1026 = vmatprep.mubr.bf16.mxu0 0
    %1027 = vmatmul.mubr.bf16.gmra.mrb[0].mxu0 %v992
    %v1028 = vpop.f32.mrb[0].mxu0
    %v1029 = vadd.f32 %v914, %v1028
    %v1030 = vpop.f32.mrb[0].mxu0
    %v1031 = vpop.f32.mrb[0].mxu0
    %v1032 = vpop.f32.mrb[0].mxu0
    %1033 = vdwg.mxu0
    %v1034 = vxor.u32 %v1029, 2147483648
    %v1035 = vmul.f32 %v1034, 1.442695
    %v1036 = vpow.pop %v1035
    %v1037 = vadd.f32 %v1036, 1.0
    %v1038 = vrcp.pop %v1037
    %v1039 = vmul.f32 1.0, %v1038
    %v1040 = vtanh.pop %v1029
    %v1041 = vmul.f32 %v1039, %v865
    %1043 = vrot.lane.b32.xlu0 %v1040, 64
    %v1044 = vpop.permute.xlu0 %1043
    %v1046 = vmul.f32 %v1039, %v1044
    %1048 = vrot.lane.b32.xlu0 %v1046, 32
    %v1049 = vpop.permute.xlu0 %1048
    %v1051 = vadd.f32 %v1041, %v1049
    %v1052 = vtanh.pop %v1051
    %1054 = vrot.lane.b32.xlu0 %v1052, 64
    %v1055 = vpop.permute.xlu0 %1054
    %v1057 = vmul.f32 %v1039, %v1055
    %v1058 = vpack.c.bf16 %v1057, %v1057
    %1060 = vrot.lane.b32.xlu0 %v1058, 32
    %v1061 = vpop.permute.xlu0 %1060
    %v1063 = vsel %vm138, %v1061, 0
    %1065 = vmatprep.subr.bf16.mxu0 0
    %1066 = vmatpush1.bf16.msra.mxu0 %v302
    %1067 = vmatprep.subr.bf16.mxu0 0
    %1068 = vmatpush1.bf16.msra.mxu0 %v303
    %1069 = vmatprep.subr.bf16.mxu0 0
    %1070 = vmatpush1.bf16.msra.mxu0 0
    %1071 = vmatprep.subr.bf16.mxu0 0
    %1072 = vmatpush1.bf16.msra.mxu0 0
    %1073 = vmatprep.subr.bf16.mxu0 0
    %1074 = vmatpush1.bf16.msra.mxu0 0
    %1075 = vmatprep.subr.bf16.mxu0 0
    %1076 = vmatpush1.bf16.msra.mxu0 0
    %1077 = vmatprep.subr.bf16.mxu0 0
    %1078 = vmatpush1.bf16.msra.mxu0 0
    %1079 = vmatprep.subr.bf16.mxu0 0
    %1080 = vmatpush1.bf16.msra.mxu0 0
    %1081 = vmatprep.subr.bf16.mxu0 0
    %1082 = vmatpush1.bf16.msra.mxu0 0
    %1083 = vmatprep.subr.bf16.mxu0 0
    %1084 = vmatpush1.bf16.msra.mxu0 0
    %1085 = vmatprep.subr.bf16.mxu0 0
    %1086 = vmatpush1.bf16.msra.mxu0 0
    %1087 = vmatprep.subr.bf16.mxu0 0
    %1088 = vmatpush1.bf16.msra.mxu0 0
    %1089 = vmatprep.subr.bf16.mxu0 0
    %1090 = vmatpush1.bf16.msra.mxu0 0
    %1091 = vmatprep.subr.bf16.mxu0 0
    %1092 = vmatpush1.bf16.msra.mxu0 0
    %1093 = vmatprep.subr.bf16.mxu0 0
    %1094 = vmatpush1.bf16.msra.mxu0 0
    %1095 = vmatprep.subr.bf16.mxu0 0
    %1096 = vmatpush1.bf16.msra.mxu0 0
    %1097 = vmatprep.mubr.bf16.mxu0 0
    %1098 = vmatmul.mubr.bf16.gmra.mrb[0].mxu0 %v1063
    %v1099 = vpop.f32.mrb[0].mxu0
    %v1100 = vadd.f32 %v125, %v1099
    %v1101 = vpop.f32.mrb[0].mxu0
    %v1102 = vpop.f32.mrb[0].mxu0
    %v1103 = vpop.f32.mrb[0].mxu0
    %1104 = vdwg.mxu0
    %1105 = vmatprep.subr.bf16.mxu0 0
    %1106 = vmatpush1.bf16.msra.mxu0 %v134
    %1107 = vmatprep.subr.bf16.mxu0 0
    %1108 = vmatpush1.bf16.msra.mxu0 %v135
    %1109 = vmatprep.subr.bf16.mxu0 0
    %1110 = vmatpush1.bf16.msra.mxu0 0
    %1111 = vmatprep.subr.bf16.mxu0 0
    %1112 = vmatpush1.bf16.msra.mxu0 0
    %1113 = vmatprep.subr.bf16.mxu0 0
    %1114 = vmatpush1.bf16.msra.mxu0 0
    %1115 = vmatprep.subr.bf16.mxu0 0
    %1116 = vmatpush1.bf16.msra.mxu0 0
    %1117 = vmatprep.subr.bf16.mxu0 0
    %1118 = vmatpush1.bf16.msra.mxu0 0
    %1119 = vmatprep.subr.bf16.mxu0 0
    %1120 = vmatpush1.bf16.msra.mxu0 0
    %1121 = vmatprep.subr.bf16.mxu0 0
    %1122 = vmatpush1.bf16.msra.mxu0 0
    %1123 = vmatprep.subr.bf16.mxu0 0
    %1124 = vmatpush1.bf16.msra.mxu0 0
    %1125 = vmatprep.subr.bf16.mxu0 0
    %1126 = vmatpush1.bf16.msra.mxu0 0
    %1127 = vmatprep.subr.bf16.mxu0 0
    %1128 = vmatpush1.bf16.msra.mxu0 0
    %1129 = vmatprep.subr.bf16.mxu0 0
    %1130 = vmatpush1.bf16.msra.mxu0 0
    %1131 = vmatprep.subr.bf16.mxu0 0
    %1132 = vmatpush1.bf16.msra.mxu0 0
    %1133 = vmatprep.subr.bf16.mxu0 0
    %1134 = vmatpush1.bf16.msra.mxu0 0
    %1135 = vmatprep.subr.bf16.mxu0 0
    %1136 = vmatpush1.bf16.msra.mxu0 0
    %1137 = vmatprep.mubr.bf16.mxu0 0
    %1138 = vmatmul.mubr.bf16.gmra.mrb[0].mxu0 %v992
    %v1139 = vpop.f32.mrb[0].mxu0
    %v1140 = vadd.f32 0.0, %v1139
    %v1141 = vpop.f32.mrb[0].mxu0
    %v1142 = vpop.f32.mrb[0].mxu0
    %v1143 = vpop.f32.mrb[0].mxu0
    %1144 = vdwg.mxu0
    %v1146 = vrot.slane %v1140, 6
    %v1148 = vadd.f32 %v119, %v1146
    %v1149 = vxor.u32 %v1148, 2147483648
    %v1150 = vmul.f32 %v1149, 1.442695
    %v1151 = vpow.pop %v1150
    %v1152 = vadd.f32 %v1151, 1.0
    %v1153 = vrcp.pop %v1152
    %v1154 = vmul.f32 1.0, %v1153
    %v1155 = vtanh.pop %v1148
    %v1157 = vrot.slane %v980, 6
    %v1159 = vmul.f32 %v1154, %v1157
    %1161 = vrot.lane.b32.xlu0 %v1155, 64
    %v1162 = vpop.permute.xlu0 %1161
    %v1164 = vmul.f32 %v1154, %v1162
    %1166 = vrot.lane.b32.xlu0 %v1164, 32
    %v1167 = vpop.permute.xlu0 %1166
    %v1169 = vadd.f32 %v1159, %v1167
    %v1170 = vtanh.pop %v1169
    %1172 = vrot.lane.b32.xlu0 %v1170, 64
    %v1173 = vpop.permute.xlu0 %1172
    %v1175 = vmul.f32 %v1154, %v1173
    %v1176 = vpack.c.bf16 %v1175, %v1175
    %v1178 = vrot.slane %v1176, 1
    %1179 = vrot.lane.b32.xlu0 %v1178, 32
    %v1180 = vpop.permute.xlu0 %1179
    %v1182 = vsel %vm138, %v1180, 0
    %1184 = vmatprep.subr.bf16.mxu0 0
    %1185 = vmatpush1.bf16.msra.mxu0 %v219
    %1186 = vmatprep.subr.bf16.mxu0 0
    %1187 = vmatpush1.bf16.msra.mxu0 %v220
    %1188 = vmatprep.subr.bf16.mxu0 0
    %1189 = vmatpush1.bf16.msra.mxu0 0
    %1190 = vmatprep.subr.bf16.mxu0 0
    %1191 = vmatpush1.bf16.msra.mxu0 0
    %1192 = vmatprep.subr.bf16.mxu0 0
    %1193 = vmatpush1.bf16.msra.mxu0 0
    %1194 = vmatprep.subr.bf16.mxu0 0
    %1195 = vmatpush1.bf16.msra.mxu0 0
    %1196 = vmatprep.subr.bf16.mxu0 0
    %1197 = vmatpush1.bf16.msra.mxu0 0
    %1198 = vmatprep.subr.bf16.mxu0 0
    %1199 = vmatpush1.bf16.msra.mxu0 0
    %1200 = vmatprep.subr.bf16.mxu0 0
    %1201 = vmatpush1.bf16.msra.mxu0 0
    %1202 = vmatprep.subr.bf16.mxu0 0
    %1203 = vmatpush1.bf16.msra.mxu0 0
    %1204 = vmatprep.subr.bf16.mxu0 0
    %1205 = vmatpush1.bf16.msra.mxu0 0
    %1206 = vmatprep.subr.bf16.mxu0 0
    %1207 = vmatpush1.bf16.msra.mxu0 0
    %1208 = vmatprep.subr.bf16.mxu0 0
    %1209 = vmatpush1.bf16.msra.mxu0 0
    %1210 = vmatprep.subr.bf16.mxu0 0
    %1211 = vmatpush1.bf16.msra.mxu0 0
    %1212 = vmatprep.subr.bf16.mxu0 0
    %1213 = vmatpush1.bf16.msra.mxu0 0
    %1214 = vmatprep.subr.bf16.mxu0 0
    %1215 = vmatpush1.bf16.msra.mxu0 0
    %1216 = vmatprep.mubr.bf16.mxu0 0
    %1217 = vmatmul.mubr.bf16.gmra.mrb[0].mxu0 %v1182
    %v1218 = vpop.f32.mrb[0].mxu0
    %v1219 = vadd.f32 %v1100, %v1218
    %v1220 = vpop.f32.mrb[0].mxu0
    %v1221 = vpop.f32.mrb[0].mxu0
    %v1222 = vpop.f32.mrb[0].mxu0
    %1223 = vdwg.mxu0
    %v1224 = vxor.u32 %v1219, 2147483648
    %v1225 = vmul.f32 %v1224, 1.442695
    %v1226 = vpow.pop %v1225
    %v1227 = vadd.f32 %v1226, 1.0
    %v1228 = vrcp.pop %v1227
    %v1229 = vmul.f32 1.0, %v1228
    %v1230 = vtanh.pop %v1219
    %v1231 = vmul.f32 %v1229, %v1051
    %1233 = vrot.lane.b32.xlu0 %v1230, 64
    %v1234 = vpop.permute.xlu0 %1233
    %v1236 = vmul.f32 %v1229, %v1234
    %1238 = vrot.lane.b32.xlu0 %v1236, 32
    %v1239 = vpop.permute.xlu0 %1238
    %v1241 = vadd.f32 %v1231, %v1239
    %v1242 = vtanh.pop %v1241
    %1244 = vrot.lane.b32.xlu0 %v1242, 64
    %v1245 = vpop.permute.xlu0 %1244
    %v1247 = vmul.f32 %v1229, %v1245
    %v1248 = vpack.c.bf16 %v1247, %v1247
    %1250 = vrot.lane.b32.xlu0 %v1248, 32
    %v1251 = vpop.permute.xlu0 %1250
    %v1253 = vsel %vm138, %v1251, 0
    %1255 = vmatprep.subr.bf16.mxu0 0
    %1256 = vmatpush1.bf16.msra.mxu0 %v302
    %1257 = vmatprep.subr.bf16.mxu0 0
    %1258 = vmatpush1.bf16.msra.mxu0 %v303
    %1259 = vmatprep.subr.bf16.mxu0 0
    %1260 = vmatpush1.bf16.msra.mxu0 0
    %1261 = vmatprep.subr.bf16.mxu0 0
    %1262 = vmatpush1.bf16.msra.mxu0 0
    %1263 = vmatprep.subr.bf16.mxu0 0
    %1264 = vmatpush1.bf16.msra.mxu0 0
    %1265 = vmatprep.subr.bf16.mxu0 0
    %1266 = vmatpush1.bf16.msra.mxu0 0
    %1267 = vmatprep.subr.bf16.mxu0 0
    %1268 = vmatpush1.bf16.msra.mxu0 0
    %1269 = vmatprep.subr.bf16.mxu0 0
    %1270 = vmatpush1.bf16.msra.mxu0 0
    %1271 = vmatprep.subr.bf16.mxu0 0
    %1272 = vmatpush1.bf16.msra.mxu0 0
    %1273 = vmatprep.subr.bf16.mxu0 0
    %1274 = vmatpush1.bf16.msra.mxu0 0
    %1275 = vmatprep.subr.bf16.mxu0 0
    %1276 = vmatpush1.bf16.msra.mxu0 0
    %1277 = vmatprep.subr.bf16.mxu0 0
    %1278 = vmatpush1.bf16.msra.mxu0 0
    %1279 = vmatprep.subr.bf16.mxu0 0
    %1280 = vmatpush1.bf16.msra.mxu0 0
    %1281 = vmatprep.subr.bf16.mxu0 0
    %1282 = vmatpush1.bf16.msra.mxu0 0
    %1283 = vmatprep.subr.bf16.mxu0 0
    %1284 = vmatpush1.bf16.msra.mxu0 0
    %1285 = vmatprep.subr.bf16.mxu0 0
    %1286 = vmatpush1.bf16.msra.mxu0 0
    %1287 = vmatprep.mubr.bf16.mxu0 0
    %1288 = vmatmul.mubr.bf16.gmra.mrb[0].mxu0 %v1253
    %v1289 = vpop.f32.mrb[0].mxu0
    %v1290 = vadd.f32 %v125, %v1289
    %v1291 = vpop.f32.mrb[0].mxu0
    %v1292 = vpop.f32.mrb[0].mxu0
    %v1293 = vpop.f32.mrb[0].mxu0
    %1294 = vdwg.mxu0
    %1295 = vmatprep.subr.bf16.mxu0 0
    %1296 = vmatpush1.bf16.msra.mxu0 %v134
    %1297 = vmatprep.subr.bf16.mxu0 0
    %1298 = vmatpush1.bf16.msra.mxu0 %v135
    %1299 = vmatprep.subr.bf16.mxu0 0
    %1300 = vmatpush1.bf16.msra.mxu0 0
    %1301 = vmatprep.subr.bf16.mxu0 0
    %1302 = vmatpush1.bf16.msra.mxu0 0
    %1303 = vmatprep.subr.bf16.mxu0 0
    %1304 = vmatpush1.bf16.msra.mxu0 0
    %1305 = vmatprep.subr.bf16.mxu0 0
    %1306 = vmatpush1.bf16.msra.mxu0 0
    %1307 = vmatprep.subr.bf16.mxu0 0
    %1308 = vmatpush1.bf16.msra.mxu0 0
    %1309 = vmatprep.subr.bf16.mxu0 0
    %1310 = vmatpush1.bf16.msra.mxu0 0
    %1311 = vmatprep.subr.bf16.mxu0 0
    %1312 = vmatpush1.bf16.msra.mxu0 0
    %1313 = vmatprep.subr.bf16.mxu0 0
    %1314 = vmatpush1.bf16.msra.mxu0 0
    %1315 = vmatprep.subr.bf16.mxu0 0
    %1316 = vmatpush1.bf16.msra.mxu0 0
    %1317 = vmatprep.subr.bf16.mxu0 0
    %1318 = vmatpush1.bf16.msra.mxu0 0
    %1319 = vmatprep.subr.bf16.mxu0 0
    %1320 = vmatpush1.bf16.msra.mxu0 0
    %1321 = vmatprep.subr.bf16.mxu0 0
    %1322 = vmatpush1.bf16.msra.mxu0 0
    %1323 = vmatprep.subr.bf16.mxu0 0
    %1324 = vmatpush1.bf16.msra.mxu0 0
    %1325 = vmatprep.subr.bf16.mxu0 0
    %1326 = vmatpush1.bf16.msra.mxu0 0
    %1327 = vmatprep.mubr.bf16.mxu0 0
    %1328 = vmatmul.mubr.bf16.gmra.mrb[0].mxu0 %v1182
    %v1329 = vpop.f32.mrb[0].mxu0
    %v1330 = vadd.f32 0.0, %v1329
    %v1331 = vpop.f32.mrb[0].mxu0
    %v1332 = vpop.f32.mrb[0].mxu0
    %v1333 = vpop.f32.mrb[0].mxu0
    %1334 = vdwg.mxu0
    %v1336 = vrot.slane %v1330, 4
    %v1338 = vadd.f32 %v119, %v1336
    %v1339 = vxor.u32 %v1338, 2147483648
    %v1340 = vmul.f32 %v1339, 1.442695
    %v1341 = vpow.pop %v1340
    %v1342 = vadd.f32 %v1341, 1.0
    %v1343 = vrcp.pop %v1342
    %v1344 = vmul.f32 1.0, %v1343
    %v1345 = vtanh.pop %v1338
    %v1347 = vrot.slane %v1169, 6
    %v1349 = vmul.f32 %v1344, %v1347
    %1351 = vrot.lane.b32.xlu0 %v1345, 64
    %v1352 = vpop.permute.xlu0 %1351
    %v1354 = vmul.f32 %v1344, %v1352
    %1356 = vrot.lane.b32.xlu0 %v1354, 32
    %v1357 = vpop.permute.xlu0 %1356
    %v1359 = vadd.f32 %v1349, %v1357
    %v1360 = vtanh.pop %v1359
    %1362 = vrot.lane.b32.xlu0 %v1360, 64
    %v1363 = vpop.permute.xlu0 %1362
    %v1365 = vmul.f32 %v1344, %v1363
    %v1366 = vpack.c.bf16 %v1365, %v1365
    %v1368 = vrot.slane %v1366, 2
    %1369 = vrot.lane.b32.xlu0 %v1368, 32
    %v1370 = vpop.permute.xlu0 %1369
    %v1372 = vsel %vm138, %v1370, 0
    %1374 = vmatprep.subr.bf16.mxu0 0
    %1375 = vmatpush1.bf16.msra.mxu0 %v219
    %1376 = vmatprep.subr.bf16.mxu0 0
    %1377 = vmatpush1.bf16.msra.mxu0 %v220
    %1378 = vmatprep.subr.bf16.mxu0 0
    %1379 = vmatpush1.bf16.msra.mxu0 0
    %1380 = vmatprep.subr.bf16.mxu0 0
    %1381 = vmatpush1.bf16.msra.mxu0 0
    %1382 = vmatprep.subr.bf16.mxu0 0
    %1383 = vmatpush1.bf16.msra.mxu0 0
    %1384 = vmatprep.subr.bf16.mxu0 0
    %1385 = vmatpush1.bf16.msra.mxu0 0
    %1386 = vmatprep.subr.bf16.mxu0 0
    %1387 = vmatpush1.bf16.msra.mxu0 0
    %1388 = vmatprep.subr.bf16.mxu0 0
    %1389 = vmatpush1.bf16.msra.mxu0 0
    %1390 = vmatprep.subr.bf16.mxu0 0
    %1391 = vmatpush1.bf16.msra.mxu0 0
    %1392 = vmatprep.subr.bf16.mxu0 0
    %1393 = vmatpush1.bf16.msra.mxu0 0
    %1394 = vmatprep.subr.bf16.mxu0 0
    %1395 = vmatpush1.bf16.msra.mxu0 0
    %1396 = vmatprep.subr.bf16.mxu0 0
    %1397 = vmatpush1.bf16.msra.mxu0 0
    %1398 = vmatprep.subr.bf16.mxu0 0
    %1399 = vmatpush1.bf16.msra.mxu0 0
    %1400 = vmatprep.subr.bf16.mxu0 0
    %1401 = vmatpush1.bf16.msra.mxu0 0
    %1402 = vmatprep.subr.bf16.mxu0 0
    %1403 = vmatpush1.bf16.msra.mxu0 0
    %1404 = vmatprep.subr.bf16.mxu0 0
    %1405 = vmatpush1.bf16.msra.mxu0 0
    %1406 = vmatprep.mubr.bf16.mxu0 0
    %1407 = vmatmul.mubr.bf16.gmra.mrb[0].mxu0 %v1372
    %v1408 = vpop.f32.mrb[0].mxu0
    %v1409 = vadd.f32 %v1290, %v1408
    %v1410 = vpop.f32.mrb[0].mxu0
    %v1411 = vpop.f32.mrb[0].mxu0
    %v1412 = vpop.f32.mrb[0].mxu0
    %1413 = vdwg.mxu0
    %v1414 = vxor.u32 %v1409, 2147483648
    %v1415 = vmul.f32 %v1414, 1.442695
    %v1416 = vpow.pop %v1415
    %v1417 = vadd.f32 %v1416, 1.0
    %v1418 = vrcp.pop %v1417
    %v1419 = vmul.f32 1.0, %v1418
    %v1420 = vtanh.pop %v1409
    %v1421 = vmul.f32 %v1419, %v1241
    %1423 = vrot.lane.b32.xlu0 %v1420, 64
    %v1424 = vpop.permute.xlu0 %1423
    %v1426 = vmul.f32 %v1419, %v1424
    %1428 = vrot.lane.b32.xlu0 %v1426, 32
    %v1429 = vpop.permute.xlu0 %1428
    %v1431 = vadd.f32 %v1421, %v1429
    %v1432 = vtanh.pop %v1431
    %1434 = vrot.lane.b32.xlu0 %v1432, 64
    %v1435 = vpop.permute.xlu0 %1434
    %v1437 = vmul.f32 %v1419, %v1435
    %v1438 = vpack.c.bf16 %v1437, %v1437
    %1440 = vrot.lane.b32.xlu0 %v1438, 32
    %v1441 = vpop.permute.xlu0 %1440
    %v1443 = vsel %vm138, %v1441, 0
    %1445 = vmatprep.subr.bf16.mxu0 0
    %1446 = vmatpush1.bf16.msra.mxu0 %v302
    %1447 = vmatprep.subr.bf16.mxu0 0
    %1448 = vmatpush1.bf16.msra.mxu0 %v303
    %1449 = vmatprep.subr.bf16.mxu0 0
    %1450 = vmatpush1.bf16.msra.mxu0 0
    %1451 = vmatprep.subr.bf16.mxu0 0
    %1452 = vmatpush1.bf16.msra.mxu0 0
    %1453 = vmatprep.subr.bf16.mxu0 0
    %1454 = vmatpush1.bf16.msra.mxu0 0
    %1455 = vmatprep.subr.bf16.mxu0 0
    %1456 = vmatpush1.bf16.msra.mxu0 0
    %1457 = vmatprep.subr.bf16.mxu0 0
    %1458 = vmatpush1.bf16.msra.mxu0 0
    %1459 = vmatprep.subr.bf16.mxu0 0
    %1460 = vmatpush1.bf16.msra.mxu0 0
    %1461 = vmatprep.subr.bf16.mxu0 0
    %1462 = vmatpush1.bf16.msra.mxu0 0
    %1463 = vmatprep.subr.bf16.mxu0 0
    %1464 = vmatpush1.bf16.msra.mxu0 0
    %1465 = vmatprep.subr.bf16.mxu0 0
    %1466 = vmatpush1.bf16.msra.mxu0 0
    %1467 = vmatprep.subr.bf16.mxu0 0
    %1468 = vmatpush1.bf16.msra.mxu0 0
    %1469 = vmatprep.subr.bf16.mxu0 0
    %1470 = vmatpush1.bf16.msra.mxu0 0
    %1471 = vmatprep.subr.bf16.mxu0 0
    %1472 = vmatpush1.bf16.msra.mxu0 0
    %1473 = vmatprep.subr.bf16.mxu0 0
    %1474 = vmatpush1.bf16.msra.mxu0 0
    %1475 = vmatprep.subr.bf16.mxu0 0
    %1476 = vmatpush1.bf16.msra.mxu0 0
    %1477 = vmatprep.mubr.bf16.mxu0 0
    %1478 = vmatmul.mubr.bf16.gmra.mrb[0].mxu0 %v1443
    %v1479 = vpop.f32.mrb[0].mxu0
    %v1480 = vadd.f32 %v125, %v1479
    %v1481 = vpop.f32.mrb[0].mxu0
    %v1482 = vpop.f32.mrb[0].mxu0
    %v1483 = vpop.f32.mrb[0].mxu0
    %1484 = vdwg.mxu0
    %1485 = vmatprep.subr.bf16.mxu0 0
    %1486 = vmatpush1.bf16.msra.mxu0 %v134
    %1487 = vmatprep.subr.bf16.mxu0 0
    %1488 = vmatpush1.bf16.msra.mxu0 %v135
    %1489 = vmatprep.subr.bf16.mxu0 0
    %1490 = vmatpush1.bf16.msra.mxu0 0
    %1491 = vmatprep.subr.bf16.mxu0 0
    %1492 = vmatpush1.bf16.msra.mxu0 0
    %1493 = vmatprep.subr.bf16.mxu0 0
    %1494 = vmatpush1.bf16.msra.mxu0 0
    %1495 = vmatprep.subr.bf16.mxu0 0
    %1496 = vmatpush1.bf16.msra.mxu0 0
    %1497 = vmatprep.subr.bf16.mxu0 0
    %1498 = vmatpush1.bf16.msra.mxu0 0
    %1499 = vmatprep.subr.bf16.mxu0 0
    %1500 = vmatpush1.bf16.msra.mxu0 0
    %1501 = vmatprep.subr.bf16.mxu0 0
    %1502 = vmatpush1.bf16.msra.mxu0 0
    %1503 = vmatprep.subr.bf16.mxu0 0
    %1504 = vmatpush1.bf16.msra.mxu0 0
    %1505 = vmatprep.subr.bf16.mxu0 0
    %1506 = vmatpush1.bf16.msra.mxu0 0
    %1507 = vmatprep.subr.bf16.mxu0 0
    %1508 = vmatpush1.bf16.msra.mxu0 0
    %1509 = vmatprep.subr.bf16.mxu0 0
    %1510 = vmatpush1.bf16.msra.mxu0 0
    %1511 = vmatprep.subr.bf16.mxu0 0
    %1512 = vmatpush1.bf16.msra.mxu0 0
    %1513 = vmatprep.subr.bf16.mxu0 0
    %1514 = vmatpush1.bf16.msra.mxu0 0
    %1515 = vmatprep.subr.bf16.mxu0 0
    %1516 = vmatpush1.bf16.msra.mxu0 0
    %1517 = vmatprep.mubr.bf16.mxu0 0
    %1518 = vmatmul.mubr.bf16.gmra.mrb[0].mxu0 %v1372
    %v1519 = vpop.f32.mrb[0].mxu0
    %v1520 = vadd.f32 0.0, %v1519
    %v1521 = vpop.f32.mrb[0].mxu0
    %v1522 = vpop.f32.mrb[0].mxu0
    %v1523 = vpop.f32.mrb[0].mxu0
    %1524 = vdwg.mxu0
    %v1526 = vrot.slane %v1520, 2
    %v1528 = vadd.f32 %v119, %v1526
    %v1529 = vxor.u32 %v1528, 2147483648
    %v1530 = vmul.f32 %v1529, 1.442695
    %v1531 = vpow.pop %v1530
    %v1532 = vadd.f32 %v1531, 1.0
    %v1533 = vrcp.pop %v1532
    %v1534 = vmul.f32 1.0, %v1533
    %v1535 = vtanh.pop %v1528
    %v1537 = vrot.slane %v1359, 6
    %v1539 = vmul.f32 %v1534, %v1537
    %1541 = vrot.lane.b32.xlu0 %v1535, 64
    %v1542 = vpop.permute.xlu0 %1541
    %v1544 = vmul.f32 %v1534, %v1542
    %1546 = vrot.lane.b32.xlu0 %v1544, 32
    %v1547 = vpop.permute.xlu0 %1546
    %v1549 = vadd.f32 %v1539, %v1547
    %v1550 = vtanh.pop %v1549
    %1552 = vrot.lane.b32.xlu0 %v1550, 64
    %v1553 = vpop.permute.xlu0 %1552
    %v1555 = vmul.f32 %v1534, %v1553
    %v1556 = vpack.c.bf16 %v1555, %v1555
    %v1558 = vrot.slane %v1556, 3
    %1559 = vrot.lane.b32.xlu0 %v1558, 32
    %v1560 = vpop.permute.xlu0 %1559
    %v1562 = vsel %vm138, %v1560, 0
    %1564 = vmatprep.subr.bf16.mxu0 0
    %1565 = vmatpush1.bf16.msra.mxu0 %v219
    %1566 = vmatprep.subr.bf16.mxu0 0
    %1567 = vmatpush1.bf16.msra.mxu0 %v220
    %1568 = vmatprep.subr.bf16.mxu0 0
    %1569 = vmatpush1.bf16.msra.mxu0 0
    %1570 = vmatprep.subr.bf16.mxu0 0
    %1571 = vmatpush1.bf16.msra.mxu0 0
    %1572 = vmatprep.subr.bf16.mxu0 0
    %1573 = vmatpush1.bf16.msra.mxu0 0
    %1574 = vmatprep.subr.bf16.mxu0 0
    %1575 = vmatpush1.bf16.msra.mxu0 0
    %1576 = vmatprep.subr.bf16.mxu0 0
    %1577 = vmatpush1.bf16.msra.mxu0 0
    %1578 = vmatprep.subr.bf16.mxu0 0
    %1579 = vmatpush1.bf16.msra.mxu0 0
    %1580 = vmatprep.subr.bf16.mxu0 0
    %1581 = vmatpush1.bf16.msra.mxu0 0
    %1582 = vmatprep.subr.bf16.mxu0 0
    %1583 = vmatpush1.bf16.msra.mxu0 0
    %1584 = vmatprep.subr.bf16.mxu0 0
    %1585 = vmatpush1.bf16.msra.mxu0 0
    %1586 = vmatprep.subr.bf16.mxu0 0
    %1587 = vmatpush1.bf16.msra.mxu0 0
    %1588 = vmatprep.subr.bf16.mxu0 0
    %1589 = vmatpush1.bf16.msra.mxu0 0
    %1590 = vmatprep.subr.bf16.mxu0 0
    %1591 = vmatpush1.bf16.msra.mxu0 0
    %1592 = vmatprep.subr.bf16.mxu0 0
    %1593 = vmatpush1.bf16.msra.mxu0 0
    %1594 = vmatprep.subr.bf16.mxu0 0
    %1595 = vmatpush1.bf16.msra.mxu0 0
    %1596 = vmatprep.mubr.bf16.mxu0 0
    %1597 = vmatmul.mubr.bf16.gmra.mrb[0].mxu0 %v1562
    %v1598 = vpop.f32.mrb[0].mxu0
    %v1599 = vadd.f32 %v1480, %v1598
    %v1600 = vpop.f32.mrb[0].mxu0
    %v1601 = vpop.f32.mrb[0].mxu0
    %v1602 = vpop.f32.mrb[0].mxu0
    %1603 = vdwg.mxu0
    %v1604 = vxor.u32 %v1599, 2147483648
    %v1605 = vmul.f32 %v1604, 1.442695
    %v1606 = vpow.pop %v1605
    %v1607 = vadd.f32 %v1606, 1.0
    %v1608 = vrcp.pop %v1607
    %v1609 = vmul.f32 1.0, %v1608
    %v1610 = vtanh.pop %v1599
    %v1611 = vmul.f32 %v1609, %v1431
    %1613 = vrot.lane.b32.xlu0 %v1610, 64
    %v1614 = vpop.permute.xlu0 %1613
    %v1616 = vmul.f32 %v1609, %v1614
    %1618 = vrot.lane.b32.xlu0 %v1616, 32
    %v1619 = vpop.permute.xlu0 %1618
    %v1621 = vadd.f32 %v1611, %v1619
    %v1622 = vtanh.pop %v1621
    %1624 = vrot.lane.b32.xlu0 %v1622, 64
    %v1625 = vpop.permute.xlu0 %1624
    %v1627 = vmul.f32 %v1609, %v1625
    %v1628 = vpack.c.bf16 %v1627, %v1627
    %v1629 = vlaneseq
    %v1630 = vshrl.u32 %v1629, 7
    %v1631 = vsub.s32 2, %v1630
    %v1632 = vrot.slane %v63, %v1631
    %1634 = vrot.lane.b32.xlu0 %v1628, 32
    %v1635 = vpop.permute.xlu0 %1634
    %v1640 = vunpack.c.l.b16 %v43
    %v1641 = vunpack.c.l.b16 %v44
    %v1642 = vunpack.c.l.b16 %v45
    %v1643 = vunpack.c.l.b16 %v46
    %v1644 = vpack.c.b16 %v1641, %v1640
    %v1645 = vpack.c.b16 %v1643, %v1642
    %v1649 = vsel %vm138, %v1635, 0
    %1651 = vmatprep.subr.bf16.mxu0 0
    %1652 = vmatpush1.bf16.msra.mxu0 %v1644
    %1653 = vmatprep.subr.bf16.mxu0 0
    %1654 = vmatpush1.bf16.msra.mxu0 %v1645
    %1655 = vmatprep.subr.bf16.mxu0 0
    %1656 = vmatpush1.bf16.msra.mxu0 0
    %1657 = vmatprep.subr.bf16.mxu0 0
    %1658 = vmatpush1.bf16.msra.mxu0 0
    %1659 = vmatprep.subr.bf16.mxu0 0
    %1660 = vmatpush1.bf16.msra.mxu0 0
    %1661 = vmatprep.subr.bf16.mxu0 0
    %1662 = vmatpush1.bf16.msra.mxu0 0
    %1663 = vmatprep.subr.bf16.mxu0 0
    %1664 = vmatpush1.bf16.msra.mxu0 0
    %1665 = vmatprep.subr.bf16.mxu0 0
    %1666 = vmatpush1.bf16.msra.mxu0 0
    %1667 = vmatprep.subr.bf16.mxu0 0
    %1668 = vmatpush1.bf16.msra.mxu0 0
    %1669 = vmatprep.subr.bf16.mxu0 0
    %1670 = vmatpush1.bf16.msra.mxu0 0
    %1671 = vmatprep.subr.bf16.mxu0 0
    %1672 = vmatpush1.bf16.msra.mxu0 0
    %1673 = vmatprep.subr.bf16.mxu0 0
    %1674 = vmatpush1.bf16.msra.mxu0 0
    %1675 = vmatprep.subr.bf16.mxu0 0
    %1676 = vmatpush1.bf16.msra.mxu0 0
    %1677 = vmatprep.subr.bf16.mxu0 0
    %1678 = vmatpush1.bf16.msra.mxu0 0
    %1679 = vmatprep.subr.bf16.mxu0 0
    %1680 = vmatpush1.bf16.msra.mxu0 0
    %1681 = vmatprep.subr.bf16.mxu0 0
    %1682 = vmatpush1.bf16.msra.mxu0 0
    %1683 = vmatprep.mubr.bf16.mxu0 0
    %1684 = vmatmul.mubr.bf16.gmra.mrb[0].mxu0 %v1649
    %v1685 = vpop.f32.mrb[0].mxu0
    %v1686 = vadd.f32 %v1632, %v1685
    %v1687 = vpop.f32.mrb[0].mxu0
    %v1688 = vpop.f32.mrb[0].mxu0
    %v1689 = vpop.f32.mrb[0].mxu0
    %1690 = vdwg.mxu0
    %vm1691 = vcmp.gt.f32.partialorder %v1686, 0.0
    %v1692 = vmul.f32 %v1686, 0.01
    %v1693 = vsel %vm1691, %v1686, %v1692
    %v1694 = vpack.c.bf16 %v1693, %v1693
    %v1695 = vlaneseq
    %v1696 = vshrl.u32 %v1695, 7
    %v1697 = vsub.s32 3, %v1696
    %v1698 = vrot.slane %v63, %v1697
    %v1715 = vunpack.c.l.b16 %v47
    %v1716 = vunpack.c.l.b16 %v48
    %v1717 = vunpack.c.l.b16 %v49
    %v1718 = vunpack.c.l.b16 %v50
    %v1719 = vunpack.c.l.b16 %v51
    %v1720 = vunpack.c.l.b16 %v52
    %v1721 = vunpack.c.l.b16 %v53
    %v1722 = vunpack.c.l.b16 %v54
    %v1723 = vunpack.c.l.b16 %v55
    %v1724 = vunpack.c.l.b16 %v56
    %v1725 = vunpack.c.l.b16 %v57
    %v1726 = vunpack.c.l.b16 %v58
    %v1727 = vunpack.c.l.b16 %v59
    %v1728 = vunpack.c.l.b16 %v60
    %v1729 = vunpack.c.l.b16 %v61
    %v1730 = vunpack.c.l.b16 %v62
    %v1731 = vpack.c.b16 %v1716, %v1715
    %v1732 = vpack.c.b16 %v1718, %v1717
    %v1733 = vpack.c.b16 %v1720, %v1719
    %v1734 = vpack.c.b16 %v1722, %v1721
    %v1735 = vpack.c.b16 %v1724, %v1723
    %v1736 = vpack.c.b16 %v1726, %v1725
    %v1737 = vpack.c.b16 %v1728, %v1727
    %v1738 = vpack.c.b16 %v1730, %v1729
    %1747 = vmatprep.subr.bf16.mxu0 0
    %1748 = vmatpush1.bf16.msra.mxu0 %v1731
    %1749 = vmatprep.subr.bf16.mxu0 0
    %1750 = vmatpush1.bf16.msra.mxu0 %v1732
    %1751 = vmatprep.subr.bf16.mxu0 0
    %1752 = vmatpush1.bf16.msra.mxu0 %v1733
    %1753 = vmatprep.subr.bf16.mxu0 0
    %1754 = vmatpush1.bf16.msra.mxu0 %v1734
    %1755 = vmatprep.subr.bf16.mxu0 0
    %1756 = vmatpush1.bf16.msra.mxu0 %v1735
    %1757 = vmatprep.subr.bf16.mxu0 0
    %1758 = vmatpush1.bf16.msra.mxu0 %v1736
    %1759 = vmatprep.subr.bf16.mxu0 0
    %1760 = vmatpush1.bf16.msra.mxu0 %v1737
    %1761 = vmatprep.subr.bf16.mxu0 0
    %1762 = vmatpush1.bf16.msra.mxu0 %v1738
    %1763 = vmatprep.subr.bf16.mxu0 0
    %1764 = vmatpush1.bf16.msra.mxu0 0
    %1765 = vmatprep.subr.bf16.mxu0 0
    %1766 = vmatpush1.bf16.msra.mxu0 0
    %1767 = vmatprep.subr.bf16.mxu0 0
    %1768 = vmatpush1.bf16.msra.mxu0 0
    %1769 = vmatprep.subr.bf16.mxu0 0
    %1770 = vmatpush1.bf16.msra.mxu0 0
    %1771 = vmatprep.subr.bf16.mxu0 0
    %1772 = vmatpush1.bf16.msra.mxu0 0
    %1773 = vmatprep.subr.bf16.mxu0 0
    %1774 = vmatpush1.bf16.msra.mxu0 0
    %1775 = vmatprep.subr.bf16.mxu0 0
    %1776 = vmatpush1.bf16.msra.mxu0 0
    %1777 = vmatprep.subr.bf16.mxu0 0
    %1778 = vmatpush1.bf16.msra.mxu0 0
    %1779 = vmatprep.mubr.bf16.mxu0 0
    %1780 = vmatmul.mubr.bf16.gmra.mrb[0].mxu0 %v1694
    %v1781 = vpop.f32.mrb[0].mxu0
    %v1782 = vadd.f32 %v1698, %v1781
    %v1783 = vpop.f32.mrb[0].mxu0
    %v1784 = vpop.f32.mrb[0].mxu0
    %v1785 = vpop.f32.mrb[0].mxu0
    %1786 = vdwg.mxu0
    %1787 = vst [vmem:[%s3] sm:$0x3] %v1782
    // Predicated region
    $region18: #{lstm_forward.1} parent=1 // pred_check
      _
    $region19: #{lstm_forward.1} parent=1 // pred_check_branch
      %1789 = sbr.rel (0) target = $region21
    $region20: #{lstm_forward.1} parent=1 // pred_region
      _
    $region21: #{lstm_forward.1} parent=1 // pred_fallthru
      _
    // Predicated region
    $region22: #{lstm_forward.1} parent=1 // pred_check
      _
    $region23: #{lstm_forward.1} parent=1 // pred_check_branch
      %1791 = sbr.rel (0) target = $region25
    $region24: #{lstm_forward.1} parent=1 // pred_region
      _
    $region25: #{lstm_forward.1} parent=1 // pred_fallthru
      _
    %1792 = vsyncpa [#allocation3], 1

</llo_original>
